<compile_context>
chip_gen: v7x
topology: tpu7x:2x2x1
jax: 0.10.0
libtpu: 0.0.40
codegen_flags: <defaults>
</compile_context>

<pallas_src>
import functools

import numpy as np
import jax
import jax.numpy as jnp
from jax.experimental import pallas as pl
from jax.experimental.pallas import tpu as pltpu


def _conv_conv_relu_kernel(x_ref, w1_ref, w2_ref, p1_ref, p2_ref, o_ref, im_ref,
                           *, H, W, KH, KW, KP):
    """Fused conv2d(valid) -> conv2d(valid) -> relu, one program for the whole batch.

    x_ref : (N, Cin, H*W)           NCHW with flattened spatial (pure reshape, no transpose)
    w1_ref: (Cmid, Cin*KH*KW)       raw OIHW weights, flattened over (c, kh, kw)
    w2_ref: (Cout, Cmid*KH*KW)      raw OIHW weights, flattened
    p1_ref: (Cin*KH*KW,  KH*KW*KP)  constant permutation + zero-pad matrix
    p2_ref: (Cmid*KH*KW, KH*KW*KP)  constant permutation + zero-pad matrix
    o_ref : (N, Cout, H2*W2)        NCHW-ordered, lane-dense output slab
    im_ref: (KH*KW*KP, N*H*W)       VMEM scratch holding the im2col operand (reused)
    """
    N, Cin, HW = x_ref.shape
    Cmid = w1_ref.shape[0]
    Cout = w2_ref.shape[0]
    NHW = N * HW
    H1, W1 = H - KH + 1, W - KW + 1
    H2, W2 = H1 - KH + 1, W1 - KW + 1
    taps = [(kh, kw) for kh in range(KH) for kw in range(KW)]
    # Zero lane tail so every shifted window below is a plain static slice (no wraparound).
    PAD = max(128, ((KH - 1) * W + (KW - 1) + 127) // 128 * 128)

    x = x_ref[...].astype(jnp.float32)                       # (N, Cin, HW)

    # Weight matrices for the weights-on-the-left im2col dots, built from the raw OIHW
    # weights with one tiny MXU matmul each:  wm[o, t*KP + c] = w[o, c, kh, kw],
    # and columns with c >= C are exactly zero (they pair with the zeroed filler rows).
    wm1 = jnp.dot(w1_ref[...].astype(jnp.float32), p1_ref[...],
                  preferred_element_type=jnp.float32)        # (Cmid, KH*KW*KP)
    wm2 = jnp.dot(w2_ref[...].astype(jnp.float32), p2_ref[...],
                  preferred_element_type=jnp.float32)        # (Cout, KH*KW*KP)

    # Fold the batch onto the lane (spatial) axis (128-aligned lane concat) + zero tail.
    xpad = jnp.concatenate([x[n] for n in range(N)]
                           + [jnp.zeros((Cin, PAD), jnp.float32)],
                           axis=-1)                          # (Cin, NHW + PAD)

    # ---- conv1: ONE im2col matmul ----
    # Feature maps stay on the full (H, W) grid: positions with ow >= W1 / oh >= H1 hold
    # garbage (shift crosses a row / batch / pad boundary) but those positions are never
    # read when forming valid conv2 outputs and are discarded by the final compaction.
    im_ref[...] = jnp.zeros(im_ref.shape, im_ref.dtype)      # zero the KP-Cin filler rows
    for t, (kh, kw) in enumerate(taps):
        s = kh * W + kw
        im_ref[t * KP:t * KP + Cin, :] = xpad[:, s:s + NHW]  # 8-aligned row block store
    y1 = jnp.dot(wm1, im_ref[...], preferred_element_type=jnp.float32)   # (Cmid, NHW)

    # ---- conv2 over the resident on-chip intermediate ----
    y1pad = jnp.concatenate([y1, jnp.zeros((Cmid, PAD), jnp.float32)], axis=-1)
    for t, (kh, kw) in enumerate(taps):
        s = kh * W + kw
        im_ref[t * KP:t * KP + Cmid, :] = y1pad[:, s:s + NHW]
    y2 = jnp.dot(wm2, im_ref[...], preferred_element_type=jnp.float32)   # (Cout, NHW)

    # relu (F.relu(..., inplace=True) is functionally plain relu).
    y2 = jnp.maximum(y2, 0.0)

    # Compact each batch's valid (H2, W2) window into the lane-dense NCHW output slab.
    for n in range(N):
        base = n * HW
        for r in range(H2):
            o_ref[n, :, r * W2:(r + 1) * W2] = (
                y2[:, base + r * W: base + r * W + W2].astype(o_ref.dtype))


def _perm_pad_matrix(C, KH, KW, KP):
    """Constant (C*KH*KW, KH*KW*KP) matrix: column t*KP + c picks raw column c*KH*KW + t."""
    T = KH * KW
    P = np.zeros((C * T, T * KP), np.float32)
    for c in range(C):
        for t in range(T):
            P[c * T + t, t * KP + c] = 1.0
    return P


@jax.jit
def ipex_conv_conv_relu(x_nchw, w1_oihw, w2_oihw):
    """IPEXConvConvRelu forward: conv2d(valid) -> conv2d(valid) -> relu.  NCHW/OIHW in, NCHW out."""
    N, Cin, H, W = x_nchw.shape
    Cmid, _, KH, KW = w1_oihw.shape
    Cout = w2_oihw.shape[0]
    H1, W1 = H - KH + 1, W - KW + 1
    H2, W2 = H1 - KH + 1, W1 - KW + 1
    # Per-tap contraction stride, rounded to the 8-sublane tile so every im2col row-block
    # store is aligned; unused rows/columns are zero and contribute nothing.
    KP = max(8, -(-max(Cin, Cmid) // 8) * 8)

    # Pure reshapes only -- no wrapper-side transposes / extra layout passes over HBM.
    x_flat = x_nchw.reshape(N, Cin, H * W)
    w1_flat = w1_oihw.reshape(Cmid, Cin * KH * KW)
    w2_flat = w2_oihw.reshape(Cout, Cmid * KH * KW)

    # Tiny compile-time constants (baked into the jitted graph) used by the in-kernel
    # weight-permutation matmuls.
    p1 = jnp.asarray(_perm_pad_matrix(Cin, KH, KW, KP))
    p2 = jnp.asarray(_perm_pad_matrix(Cmid, KH, KW, KP))

    kernel = functools.partial(_conv_conv_relu_kernel, H=H, W=W, KH=KH, KW=KW, KP=KP)
    vmem_spec = pl.BlockSpec(memory_space=pltpu.MemorySpace.VMEM)

    out_flat = pl.pallas_call(
        kernel,
        out_shape=jax.ShapeDtypeStruct((N, Cout, H2 * W2), x_nchw.dtype),
        in_specs=[vmem_spec] * 5,          # whole arrays in VMEM, single program (no grid)
        out_specs=vmem_spec,
        scratch_shapes=[pltpu.VMEM((KH * KW * KP, N * H * W), jnp.float32)],
    )(x_flat, w1_flat, w2_flat, p1, p2)

    # Kernel output is already NCHW-ordered with flattened spatial dims.
    return out_flat.reshape(N, Cout, H2, W2)


if __name__ == "__main__":
    # IPEXConvConvRelu(in_channels=4, out_channels=8, kernel_size=3) on a (2, 4, 16, 16) input.
    N, Cin, H, W = 2, 4, 16, 16
    Cout, K = 8, 3

    key = jax.random.PRNGKey(0)
    kx, k1, k2 = jax.random.split(key, 3)

    x = jax.random.normal(kx, (N, Cin, H, W), dtype=jnp.float32)
    # PyTorch Conv2d weight layout: OIHW, bias=False.
    w1 = jax.random.normal(k1, (Cout, Cin, K, K), dtype=jnp.float32) * 0.1
    w2 = jax.random.normal(k2, (Cout, Cout, K, K), dtype=jnp.float32) * 0.1

    out = jax.block_until_ready(ipex_conv_conv_relu(x, w1, w2))

    # Reference: same NCHW/OIHW, stride=1, padding=0 semantics as torch.nn.Conv2d.
    dn = ("NCHW", "OIHW", "NCHW")
    ref = jax.lax.conv_general_dilated(x, w1, (1, 1), "VALID", dimension_numbers=dn)
    ref = jax.lax.conv_general_dilated(ref, w2, (1, 1), "VALID", dimension_numbers=dn)
    ref = jnp.maximum(ref, 0.0)

    assert out.shape == (N, Cout, H - 2 * (K - 1), W - 2 * (K - 1)), out.shape
    # Both paths run the MXU at default (bf16-pass) f32 precision; tolerance covers a
    # possible difference in pass strategy between Mosaic matmul and XLA's conv.
    max_err = float(jnp.max(jnp.abs(out - ref)))
    assert jnp.allclose(out, ref, atol=2e-2, rtol=2e-2), max_err

    print("KERNEL_OK")
</pallas_src>

<mosaic_0001>
module attributes {stable_mosaic.version = 11 : i64} {
  func.func @_conv_conv_relu_kernel(%arg0: memref<2x4x256xf32, #tpu.memory_space<vmem>>, %arg1: memref<8x36xf32, #tpu.memory_space<vmem>>, %arg2: memref<8x72xf32, #tpu.memory_space<vmem>>, %arg3: memref<36x72xf32, #tpu.memory_space<vmem>>, %arg4: memref<72x72xf32, #tpu.memory_space<vmem>>, %arg5: memref<2x8x144xf32, #tpu.memory_space<vmem>>, %arg6: memref<72x512xf32, #tpu.memory_space<vmem>>) attributes {dimension_semantics = [], scalar_prefetch = 0 : i64, scratch_operands = 1 : i64, tpu.core_type = #tpu.core_type<tc>} {
    %c0 = arith.constant 0 : index
    %c0_0 = arith.constant 0 : index
    %c0_1 = arith.constant 0 : index
    %0 = vector.load %arg0[%c0, %c0_0, %c0_1] : memref<2x4x256xf32, #tpu.memory_space<vmem>>, vector<2x4x256xf32>
    %c0_2 = arith.constant 0 : index
    %c0_3 = arith.constant 0 : index
    %1 = vector.load %arg1[%c0_2, %c0_3] : memref<8x36xf32, #tpu.memory_space<vmem>>, vector<8x36xf32>
    %c0_4 = arith.constant 0 : index
    %c0_5 = arith.constant 0 : index
    %2 = vector.load %arg3[%c0_4, %c0_5] : memref<36x72xf32, #tpu.memory_space<vmem>>, vector<36x72xf32>
    %cst = arith.constant dense<0.000000e+00> : vector<8x72xf32>
    %3 = tpu.matmul %1, %2, %cst {dimension_numbers = #tpu.dot_dimension_numbers<[1], [0], [0], [1], [0, 0, 1, 1], [], []>} : vector<8x36xf32>, vector<36x72xf32>, vector<8x72xf32> -> vector<8x72xf32>
    %c0_6 = arith.constant 0 : index
    %c0_7 = arith.constant 0 : index
    %4 = vector.load %arg2[%c0_6, %c0_7] : memref<8x72xf32, #tpu.memory_space<vmem>>, vector<8x72xf32>
    %c0_8 = arith.constant 0 : index
    %c0_9 = arith.constant 0 : index
    %5 = vector.load %arg4[%c0_8, %c0_9] : memref<72x72xf32, #tpu.memory_space<vmem>>, vector<72x72xf32>
    %cst_10 = arith.constant dense<0.000000e+00> : vector<8x72xf32>
    %6 = tpu.matmul %4, %5, %cst_10 {dimension_numbers = #tpu.dot_dimension_numbers<[1], [0], [0], [1], [0, 0, 1, 1], [], []>} : vector<8x72xf32>, vector<72x72xf32>, vector<8x72xf32> -> vector<8x72xf32>
    %7 = vector.extract_strided_slice %0 {offsets = [0, 0, 0], sizes = [1, 4, 256], strides = [1, 1, 1]} : vector<2x4x256xf32> to vector<1x4x256xf32>
    %8 = vector.shape_cast %7 : vector<1x4x256xf32> to vector<4x256xf32>
    %9 = vector.extract_strided_slice %0 {offsets = [1, 0, 0], sizes = [1, 4, 256], strides = [1, 1, 1]} : vector<2x4x256xf32> to vector<1x4x256xf32>
    %10 = vector.shape_cast %9 : vector<1x4x256xf32> to vector<4x256xf32>
    %cst_11 = arith.constant 0.000000e+00 : f32
    %11 = vector.broadcast %cst_11 : f32 to vector<4x128xf32>
    %12 = tpu.concatenate %8, %10, %11 in 1 : vector<4x256xf32>, vector<4x256xf32>, vector<4x128xf32> -> vector<4x640xf32>
    %cst_12 = arith.constant 0.000000e+00 : f32
    %13 = vector.broadcast %cst_12 : f32 to vector<72x512xf32>
    %c0_13 = arith.constant 0 : index
    %c0_14 = arith.constant 0 : index
    %14 = vector.load %arg6[%c0_13, %c0_14] : memref<72x512xf32, #tpu.memory_space<vmem>>, vector<72x512xf32>
    tpu.vector_store %arg6[%c0_13, %c0_14], %13 {strides = array<i32>} : memref<72x512xf32, #tpu.memory_space<vmem>>, vector<72x512xf32>,
    %15 = vector.extract_strided_slice %12 {offsets = [0, 0], sizes = [4, 512], strides = [1, 1]} : vector<4x640xf32> to vector<4x512xf32>
    %c0_15 = arith.constant 0 : index
    %c0_16 = arith.constant 0 : index
    %16 = vector.load %arg6[%c0_15, %c0_16] : memref<72x512xf32, #tpu.memory_space<vmem>>, vector<4x512xf32>
    tpu.vector_store %arg6[%c0_15, %c0_16], %15 {strides = array<i32>} : memref<72x512xf32, #tpu.memory_space<vmem>>, vector<4x512xf32>,
    %17 = vector.extract_strided_slice %12 {offsets = [0, 1], sizes = [4, 512], strides = [1, 1]} : vector<4x640xf32> to vector<4x512xf32>
    %c8 = arith.constant 8 : index
    %c0_17 = arith.constant 0 : index
    %18 = vector.load %arg6[%c8, %c0_17] : memref<72x512xf32, #tpu.memory_space<vmem>>, vector<4x512xf32>
    tpu.vector_store %arg6[%c8, %c0_17], %17 {strides = array<i32>} : memref<72x512xf32, #tpu.memory_space<vmem>>, vector<4x512xf32>,
    %19 = vector.extract_strided_slice %12 {offsets = [0, 2], sizes = [4, 512], strides = [1, 1]} : vector<4x640xf32> to vector<4x512xf32>
    %c16 = arith.constant 16 : index
    %c0_18 = arith.constant 0 : index
    %20 = vector.load %arg6[%c16, %c0_18] : memref<72x512xf32, #tpu.memory_space<vmem>>, vector<4x512xf32>
    tpu.vector_store %arg6[%c16, %c0_18], %19 {strides = array<i32>} : memref<72x512xf32, #tpu.memory_space<vmem>>, vector<4x512xf32>,
    %21 = vector.extract_strided_slice %12 {offsets = [0, 16], sizes = [4, 512], strides = [1, 1]} : vector<4x640xf32> to vector<4x512xf32>
    %c24 = arith.constant 24 : index
    %c0_19 = arith.constant 0 : index
    %22 = vector.load %arg6[%c24, %c0_19] : memref<72x512xf32, #tpu.memory_space<vmem>>, vector<4x512xf32>
    tpu.vector_store %arg6[%c24, %c0_19], %21 {strides = array<i32>} : memref<72x512xf32, #tpu.memory_space<vmem>>, vector<4x512xf32>,
    %23 = vector.extract_strided_slice %12 {offsets = [0, 17], sizes = [4, 512], strides = [1, 1]} : vector<4x640xf32> to vector<4x512xf32>
    %c32 = arith.constant 32 : index
    %c0_20 = arith.constant 0 : index
    %24 = vector.load %arg6[%c32, %c0_20] : memref<72x512xf32, #tpu.memory_space<vmem>>, vector<4x512xf32>
    tpu.vector_store %arg6[%c32, %c0_20], %23 {strides = array<i32>} : memref<72x512xf32, #tpu.memory_space<vmem>>, vector<4x512xf32>,
    %25 = vector.extract_strided_slice %12 {offsets = [0, 18], sizes = [4, 512], strides = [1, 1]} : vector<4x640xf32> to vector<4x512xf32>
    %c40 = arith.constant 40 : index
    %c0_21 = arith.constant 0 : index
    %26 = vector.load %arg6[%c40, %c0_21] : memref<72x512xf32, #tpu.memory_space<vmem>>, vector<4x512xf32>
    tpu.vector_store %arg6[%c40, %c0_21], %25 {strides = array<i32>} : memref<72x512xf32, #tpu.memory_space<vmem>>, vector<4x512xf32>,
    %27 = vector.extract_strided_slice %12 {offsets = [0, 32], sizes = [4, 512], strides = [1, 1]} : vector<4x640xf32> to vector<4x512xf32>
    %c48 = arith.constant 48 : index
    %c0_22 = arith.constant 0 : index
    %28 = vector.load %arg6[%c48, %c0_22] : memref<72x512xf32, #tpu.memory_space<vmem>>, vector<4x512xf32>
    tpu.vector_store %arg6[%c48, %c0_22], %27 {strides = array<i32>} : memref<72x512xf32, #tpu.memory_space<vmem>>, vector<4x512xf32>,
    %29 = vector.extract_strided_slice %12 {offsets = [0, 33], sizes = [4, 512], strides = [1, 1]} : vector<4x640xf32> to vector<4x512xf32>
    %c56 = arith.constant 56 : index
    %c0_23 = arith.constant 0 : index
    %30 = vector.load %arg6[%c56, %c0_23] : memref<72x512xf32, #tpu.memory_space<vmem>>, vector<4x512xf32>
    tpu.vector_store %arg6[%c56, %c0_23], %29 {strides = array<i32>} : memref<72x512xf32, #tpu.memory_space<vmem>>, vector<4x512xf32>,
    %31 = vector.extract_strided_slice %12 {offsets = [0, 34], sizes = [4, 512], strides = [1, 1]} : vector<4x640xf32> to vector<4x512xf32>
    %c64 = arith.constant 64 : index
    %c0_24 = arith.constant 0 : index
    %32 = vector.load %arg6[%c64, %c0_24] : memref<72x512xf32, #tpu.memory_space<vmem>>, vector<4x512xf32>
    tpu.vector_store %arg6[%c64, %c0_24], %31 {strides = array<i32>} : memref<72x512xf32, #tpu.memory_space<vmem>>, vector<4x512xf32>,
    %c0_25 = arith.constant 0 : index
    %c0_26 = arith.constant 0 : index
    %33 = vector.load %arg6[%c0_25, %c0_26] : memref<72x512xf32, #tpu.memory_space<vmem>>, vector<72x512xf32>
    %cst_27 = arith.constant dense<0.000000e+00> : vector<8x512xf32>
    %34 = tpu.matmul %3, %33, %cst_27 {dimension_numbers = #tpu.dot_dimension_numbers<[1], [0], [0], [1], [0, 0, 1, 1], [], []>} : vector<8x72xf32>, vector<72x512xf32>, vector<8x512xf32> -> vector<8x512xf32>
    %cst_28 = arith.constant 0.000000e+00 : f32
    %35 = vector.broadcast %cst_28 : f32 to vector<8x128xf32>
    %36 = tpu.concatenate %34, %35 in 1 : vector<8x512xf32>, vector<8x128xf32> -> vector<8x640xf32>
    %37 = vector.extract_strided_slice %36 {offsets = [0, 0], sizes = [8, 512], strides = [1, 1]} : vector<8x640xf32> to vector<8x512xf32>
    %c0_29 = arith.constant 0 : index
    %c0_30 = arith.constant 0 : index
    %38 = vector.load %arg6[%c0_29, %c0_30] : memref<72x512xf32, #tpu.memory_space<vmem>>, vector<8x512xf32>
    tpu.vector_store %arg6[%c0_29, %c0_30], %37 {strides = array<i32>} : memref<72x512xf32, #tpu.memory_space<vmem>>, vector<8x512xf32>,
    %39 = vector.extract_strided_slice %36 {offsets = [0, 1], sizes = [8, 512], strides = [1, 1]} : vector<8x640xf32> to vector<8x512xf32>
    %c8_31 = arith.constant 8 : index
    %c0_32 = arith.constant 0 : index
    %40 = vector.load %arg6[%c8_31, %c0_32] : memref<72x512xf32, #tpu.memory_space<vmem>>, vector<8x512xf32>
    tpu.vector_store %arg6[%c8_31, %c0_32], %39 {strides = array<i32>} : memref<72x512xf32, #tpu.memory_space<vmem>>, vector<8x512xf32>,
    %41 = vector.extract_strided_slice %36 {offsets = [0, 2], sizes = [8, 512], strides = [1, 1]} : vector<8x640xf32> to vector<8x512xf32>
    %c16_33 = arith.constant 16 : index
    %c0_34 = arith.constant 0 : index
    %42 = vector.load %arg6[%c16_33, %c0_34] : memref<72x512xf32, #tpu.memory_space<vmem>>, vector<8x512xf32>
    tpu.vector_store %arg6[%c16_33, %c0_34], %41 {strides = array<i32>} : memref<72x512xf32, #tpu.memory_space<vmem>>, vector<8x512xf32>,
    %43 = vector.extract_strided_slice %36 {offsets = [0, 16], sizes = [8, 512], strides = [1, 1]} : vector<8x640xf32> to vector<8x512xf32>
    %c24_35 = arith.constant 24 : index
    %c0_36 = arith.constant 0 : index
    %44 = vector.load %arg6[%c24_35, %c0_36] : memref<72x512xf32, #tpu.memory_space<vmem>>, vector<8x512xf32>
    tpu.vector_store %arg6[%c24_35, %c0_36], %43 {strides = array<i32>} : memref<72x512xf32, #tpu.memory_space<vmem>>, vector<8x512xf32>,
    %45 = vector.extract_strided_slice %36 {offsets = [0, 17], sizes = [8, 512], strides = [1, 1]} : vector<8x640xf32> to vector<8x512xf32>
    %c32_37 = arith.constant 32 : index
    %c0_38 = arith.constant 0 : index
    %46 = vector.load %arg6[%c32_37, %c0_38] : memref<72x512xf32, #tpu.memory_space<vmem>>, vector<8x512xf32>
    tpu.vector_store %arg6[%c32_37, %c0_38], %45 {strides = array<i32>} : memref<72x512xf32, #tpu.memory_space<vmem>>, vector<8x512xf32>,
    %47 = vector.extract_strided_slice %36 {offsets = [0, 18], sizes = [8, 512], strides = [1, 1]} : vector<8x640xf32> to vector<8x512xf32>
    %c40_39 = arith.constant 40 : index
    %c0_40 = arith.constant 0 : index
    %48 = vector.load %arg6[%c40_39, %c0_40] : memref<72x512xf32, #tpu.memory_space<vmem>>, vector<8x512xf32>
    tpu.vector_store %arg6[%c40_39, %c0_40], %47 {strides = array<i32>} : memref<72x512xf32, #tpu.memory_space<vmem>>, vector<8x512xf32>,
    %49 = vector.extract_strided_slice %36 {offsets = [0, 32], sizes = [8, 512], strides = [1, 1]} : vector<8x640xf32> to vector<8x512xf32>
    %c48_41 = arith.constant 48 : index
    %c0_42 = arith.constant 0 : index
    %50 = vector.load %arg6[%c48_41, %c0_42] : memref<72x512xf32, #tpu.memory_space<vmem>>, vector<8x512xf32>
    tpu.vector_store %arg6[%c48_41, %c0_42], %49 {strides = array<i32>} : memref<72x512xf32, #tpu.memory_space<vmem>>, vector<8x512xf32>,
    %51 = vector.extract_strided_slice %36 {offsets = [0, 33], sizes = [8, 512], strides = [1, 1]} : vector<8x640xf32> to vector<8x512xf32>
    %c56_43 = arith.constant 56 : index
    %c0_44 = arith.constant 0 : index
    %52 = vector.load %arg6[%c56_43, %c0_44] : memref<72x512xf32, #tpu.memory_space<vmem>>, vector<8x512xf32>
    tpu.vector_store %arg6[%c56_43, %c0_44], %51 {strides = array<i32>} : memref<72x512xf32, #tpu.memory_space<vmem>>, vector<8x512xf32>,
    %53 = vector.extract_strided_slice %36 {offsets = [0, 34], sizes = [8, 512], strides = [1, 1]} : vector<8x640xf32> to vector<8x512xf32>
    %c64_45 = arith.constant 64 : index
    %c0_46 = arith.constant 0 : index
    %54 = vector.load %arg6[%c64_45, %c0_46] : memref<72x512xf32, #tpu.memory_space<vmem>>, vector<8x512xf32>
    tpu.vector_store %arg6[%c64_45, %c0_46], %53 {strides = array<i32>} : memref<72x512xf32, #tpu.memory_space<vmem>>, vector<8x512xf32>,
    %c0_47 = arith.constant 0 : index
    %c0_48 = arith.constant 0 : index
    %55 = vector.load %arg6[%c0_47, %c0_48] : memref<72x512xf32, #tpu.memory_space<vmem>>, vector<72x512xf32>
    %cst_49 = arith.constant dense<0.000000e+00> : vector<8x512xf32>
    %56 = tpu.matmul %6, %55, %cst_49 {dimension_numbers = #tpu.dot_dimension_numbers<[1], [0], [0], [1], [0, 0, 1, 1], [], []>} : vector<8x72xf32>, vector<72x512xf32>, vector<8x512xf32> -> vector<8x512xf32>
    %cst_50 = arith.constant 0.000000e+00 : f32
    %57 = vector.broadcast %cst_50 : f32 to vector<8x512xf32>
    %58 = arith.maximumf %56, %57 : vector<8x512xf32>
    %59 = vector.extract_strided_slice %58 {offsets = [0, 0], sizes = [8, 12], strides = [1, 1]} : vector<8x512xf32> to vector<8x12xf32>
    %c0_51 = arith.constant 0 : index
    %c0_52 = arith.constant 0 : index
    %c0_53 = arith.constant 0 : index
    %60 = vector.load %arg5[%c0_51, %c0_52, %c0_53] : memref<2x8x144xf32, #tpu.memory_space<vmem>>, vector<1x8x12xf32>
    %61 = vector.shape_cast %60 : vector<1x8x12xf32> to vector<8x12xf32>
    %62 = vector.shape_cast %59 : vector<8x12xf32> to vector<1x8x12xf32>
    tpu.vector_store %arg5[%c0_51, %c0_52, %c0_53], %62 {strides = array<i32>} : memref<2x8x144xf32, #tpu.memory_space<vmem>>, vector<1x8x12xf32>,
    %63 = vector.extract_strided_slice %58 {offsets = [0, 16], sizes = [8, 12], strides = [1, 1]} : vector<8x512xf32> to vector<8x12xf32>
    %c0_54 = arith.constant 0 : index
    %c0_55 = arith.constant 0 : index
    %c12 = arith.constant 12 : index
    %64 = vector.load %arg5[%c0_54, %c0_55, %c12] : memref<2x8x144xf32, #tpu.memory_space<vmem>>, vector<1x8x12xf32>
    %65 = vector.shape_cast %64 : vector<1x8x12xf32> to vector<8x12xf32>
    %66 = vector.shape_cast %63 : vector<8x12xf32> to vector<1x8x12xf32>
    tpu.vector_store %arg5[%c0_54, %c0_55, %c12], %66 {strides = array<i32>} : memref<2x8x144xf32, #tpu.memory_space<vmem>>, vector<1x8x12xf32>,
    %67 = vector.extract_strided_slice %58 {offsets = [0, 32], sizes = [8, 12], strides = [1, 1]} : vector<8x512xf32> to vector<8x12xf32>
    %c0_56 = arith.constant 0 : index
    %c0_57 = arith.constant 0 : index
    %c24_58 = arith.constant 24 : index
    %68 = vector.load %arg5[%c0_56, %c0_57, %c24_58] : memref<2x8x144xf32, #tpu.memory_space<vmem>>, vector<1x8x12xf32>
    %69 = vector.shape_cast %68 : vector<1x8x12xf32> to vector<8x12xf32>
    %70 = vector.shape_cast %67 : vector<8x12xf32> to vector<1x8x12xf32>
    tpu.vector_store %arg5[%c0_56, %c0_57, %c24_58], %70 {strides = array<i32>} : memref<2x8x144xf32, #tpu.memory_space<vmem>>, vector<1x8x12xf32>,
    %71 = vector.extract_strided_slice %58 {offsets = [0, 48], sizes = [8, 12], strides = [1, 1]} : vector<8x512xf32> to vector<8x12xf32>
    %c0_59 = arith.constant 0 : index
    %c0_60 = arith.constant 0 : index
    %c36 = arith.constant 36 : index
    %72 = vector.load %arg5[%c0_59, %c0_60, %c36] : memref<2x8x144xf32, #tpu.memory_space<vmem>>, vector<1x8x12xf32>
    %73 = vector.shape_cast %72 : vector<1x8x12xf32> to vector<8x12xf32>
    %74 = vector.shape_cast %71 : vector<8x12xf32> to vector<1x8x12xf32>
    tpu.vector_store %arg5[%c0_59, %c0_60, %c36], %74 {strides = array<i32>} : memref<2x8x144xf32, #tpu.memory_space<vmem>>, vector<1x8x12xf32>,
    %75 = vector.extract_strided_slice %58 {offsets = [0, 64], sizes = [8, 12], strides = [1, 1]} : vector<8x512xf32> to vector<8x12xf32>
    %c0_61 = arith.constant 0 : index
    %c0_62 = arith.constant 0 : index
    %c48_63 = arith.constant 48 : index
    %76 = vector.load %arg5[%c0_61, %c0_62, %c48_63] : memref<2x8x144xf32, #tpu.memory_space<vmem>>, vector<1x8x12xf32>
    %77 = vector.shape_cast %76 : vector<1x8x12xf32> to vector<8x12xf32>
    %78 = vector.shape_cast %75 : vector<8x12xf32> to vector<1x8x12xf32>
    tpu.vector_store %arg5[%c0_61, %c0_62, %c48_63], %78 {strides = array<i32>} : memref<2x8x144xf32, #tpu.memory_space<vmem>>, vector<1x8x12xf32>,
    %79 = vector.extract_strided_slice %58 {offsets = [0, 80], sizes = [8, 12], strides = [1, 1]} : vector<8x512xf32> to vector<8x12xf32>
    %c0_64 = arith.constant 0 : index
    %c0_65 = arith.constant 0 : index
    %c60 = arith.constant 60 : index
    %80 = vector.load %arg5[%c0_64, %c0_65, %c60] : memref<2x8x144xf32, #tpu.memory_space<vmem>>, vector<1x8x12xf32>
    %81 = vector.shape_cast %80 : vector<1x8x12xf32> to vector<8x12xf32>
    %82 = vector.shape_cast %79 : vector<8x12xf32> to vector<1x8x12xf32>
    tpu.vector_store %arg5[%c0_64, %c0_65, %c60], %82 {strides = array<i32>} : memref<2x8x144xf32, #tpu.memory_space<vmem>>, vector<1x8x12xf32>,
    %83 = vector.extract_strided_slice %58 {offsets = [0, 96], sizes = [8, 12], strides = [1, 1]} : vector<8x512xf32> to vector<8x12xf32>
    %c0_66 = arith.constant 0 : index
    %c0_67 = arith.constant 0 : index
    %c72 = arith.constant 72 : index
    %84 = vector.load %arg5[%c0_66, %c0_67, %c72] : memref<2x8x144xf32, #tpu.memory_space<vmem>>, vector<1x8x12xf32>
    %85 = vector.shape_cast %84 : vector<1x8x12xf32> to vector<8x12xf32>
    %86 = vector.shape_cast %83 : vector<8x12xf32> to vector<1x8x12xf32>
    tpu.vector_store %arg5[%c0_66, %c0_67, %c72], %86 {strides = array<i32>} : memref<2x8x144xf32, #tpu.memory_space<vmem>>, vector<1x8x12xf32>,
    %87 = vector.extract_strided_slice %58 {offsets = [0, 112], sizes = [8, 12], strides = [1, 1]} : vector<8x512xf32> to vector<8x12xf32>
    %c0_68 = arith.constant 0 : index
    %c0_69 = arith.constant 0 : index
    %c84 = arith.constant 84 : index
    %88 = vector.load %arg5[%c0_68, %c0_69, %c84] : memref<2x8x144xf32, #tpu.memory_space<vmem>>, vector<1x8x12xf32>
    %89 = vector.shape_cast %88 : vector<1x8x12xf32> to vector<8x12xf32>
    %90 = vector.shape_cast %87 : vector<8x12xf32> to vector<1x8x12xf32>
    tpu.vector_store %arg5[%c0_68, %c0_69, %c84], %90 {strides = array<i32>} : memref<2x8x144xf32, #tpu.memory_space<vmem>>, vector<1x8x12xf32>,
    %91 = vector.extract_strided_slice %58 {offsets = [0, 128], sizes = [8, 12], strides = [1, 1]} : vector<8x512xf32> to vector<8x12xf32>
    %c0_70 = arith.constant 0 : index
    %c0_71 = arith.constant 0 : index
    %c96 = arith.constant 96 : index
    %92 = vector.load %arg5[%c0_70, %c0_71, %c96] : memref<2x8x144xf32, #tpu.memory_space<vmem>>, vector<1x8x12xf32>
    %93 = vector.shape_cast %92 : vector<1x8x12xf32> to vector<8x12xf32>
    %94 = vector.shape_cast %91 : vector<8x12xf32> to vector<1x8x12xf32>
    tpu.vector_store %arg5[%c0_70, %c0_71, %c96], %94 {strides = array<i32>} : memref<2x8x144xf32, #tpu.memory_space<vmem>>, vector<1x8x12xf32>,
    %95 = vector.extract_strided_slice %58 {offsets = [0, 144], sizes = [8, 12], strides = [1, 1]} : vector<8x512xf32> to vector<8x12xf32>
    %c0_72 = arith.constant 0 : index
    %c0_73 = arith.constant 0 : index
    %c108 = arith.constant 108 : index
    %96 = vector.load %arg5[%c0_72, %c0_73, %c108] : memref<2x8x144xf32, #tpu.memory_space<vmem>>, vector<1x8x12xf32>
    %97 = vector.shape_cast %96 : vector<1x8x12xf32> to vector<8x12xf32>
    %98 = vector.shape_cast %95 : vector<8x12xf32> to vector<1x8x12xf32>
    tpu.vector_store %arg5[%c0_72, %c0_73, %c108], %98 {strides = array<i32>} : memref<2x8x144xf32, #tpu.memory_space<vmem>>, vector<1x8x12xf32>,
    %99 = vector.extract_strided_slice %58 {offsets = [0, 160], sizes = [8, 12], strides = [1, 1]} : vector<8x512xf32> to vector<8x12xf32>
    %c0_74 = arith.constant 0 : index
    %c0_75 = arith.constant 0 : index
    %c120 = arith.constant 120 : index
    %100 = vector.load %arg5[%c0_74, %c0_75, %c120] : memref<2x8x144xf32, #tpu.memory_space<vmem>>, vector<1x8x12xf32>
    %101 = vector.shape_cast %100 : vector<1x8x12xf32> to vector<8x12xf32>
    %102 = vector.shape_cast %99 : vector<8x12xf32> to vector<1x8x12xf32>
    tpu.vector_store %arg5[%c0_74, %c0_75, %c120], %102 {strides = array<i32>} : memref<2x8x144xf32, #tpu.memory_space<vmem>>, vector<1x8x12xf32>,
    %103 = vector.extract_strided_slice %58 {offsets = [0, 176], sizes = [8, 12], strides = [1, 1]} : vector<8x512xf32> to vector<8x12xf32>
    %c0_76 = arith.constant 0 : index
    %c0_77 = arith.constant 0 : index
    %c132 = arith.constant 132 : index
    %104 = vector.load %arg5[%c0_76, %c0_77, %c132] : memref<2x8x144xf32, #tpu.memory_space<vmem>>, vector<1x8x12xf32>
    %105 = vector.shape_cast %104 : vector<1x8x12xf32> to vector<8x12xf32>
    %106 = vector.shape_cast %103 : vector<8x12xf32> to vector<1x8x12xf32>
    tpu.vector_store %arg5[%c0_76, %c0_77, %c132], %106 {strides = array<i32>} : memref<2x8x144xf32, #tpu.memory_space<vmem>>, vector<1x8x12xf32>,
    %107 = vector.extract_strided_slice %58 {offsets = [0, 256], sizes = [8, 12], strides = [1, 1]} : vector<8x512xf32> to vector<8x12xf32>
    %c1 = arith.constant 1 : index
    %c0_78 = arith.constant 0 : index
    %c0_79 = arith.constant 0 : index
    %108 = vector.load %arg5[%c1, %c0_78, %c0_79] : memref<2x8x144xf32, #tpu.memory_space<vmem>>, vector<1x8x12xf32>
    %109 = vector.shape_cast %108 : vector<1x8x12xf32> to vector<8x12xf32>
    %110 = vector.shape_cast %107 : vector<8x12xf32> to vector<1x8x12xf32>
    tpu.vector_store %arg5[%c1, %c0_78, %c0_79], %110 {strides = array<i32>} : memref<2x8x144xf32, #tpu.memory_space<vmem>>, vector<1x8x12xf32>,
    %111 = vector.extract_strided_slice %58 {offsets = [0, 272], sizes = [8, 12], strides = [1, 1]} : vector<8x512xf32> to vector<8x12xf32>
    %c1_80 = arith.constant 1 : index
    %c0_81 = arith.constant 0 : index
    %c12_82 = arith.constant 12 : index
    %112 = vector.load %arg5[%c1_80, %c0_81, %c12_82] : memref<2x8x144xf32, #tpu.memory_space<vmem>>, vector<1x8x12xf32>
    %113 = vector.shape_cast %112 : vector<1x8x12xf32> to vector<8x12xf32>
    %114 = vector.shape_cast %111 : vector<8x12xf32> to vector<1x8x12xf32>
    tpu.vector_store %arg5[%c1_80, %c0_81, %c12_82], %114 {strides = array<i32>} : memref<2x8x144xf32, #tpu.memory_space<vmem>>, vector<1x8x12xf32>,
    %115 = vector.extract_strided_slice %58 {offsets = [0, 288], sizes = [8, 12], strides = [1, 1]} : vector<8x512xf32> to vector<8x12xf32>
    %c1_83 = arith.constant 1 : index
    %c0_84 = arith.constant 0 : index
    %c24_85 = arith.constant 24 : index
    %116 = vector.load %arg5[%c1_83, %c0_84, %c24_85] : memref<2x8x144xf32, #tpu.memory_space<vmem>>, vector<1x8x12xf32>
    %117 = vector.shape_cast %116 : vector<1x8x12xf32> to vector<8x12xf32>
    %118 = vector.shape_cast %115 : vector<8x12xf32> to vector<1x8x12xf32>
    tpu.vector_store %arg5[%c1_83, %c0_84, %c24_85], %118 {strides = array<i32>} : memref<2x8x144xf32, #tpu.memory_space<vmem>>, vector<1x8x12xf32>,
    %119 = vector.extract_strided_slice %58 {offsets = [0, 304], sizes = [8, 12], strides = [1, 1]} : vector<8x512xf32> to vector<8x12xf32>
    %c1_86 = arith.constant 1 : index
    %c0_87 = arith.constant 0 : index
    %c36_88 = arith.constant 36 : index
    %120 = vector.load %arg5[%c1_86, %c0_87, %c36_88] : memref<2x8x144xf32, #tpu.memory_space<vmem>>, vector<1x8x12xf32>
    %121 = vector.shape_cast %120 : vector<1x8x12xf32> to vector<8x12xf32>
    %122 = vector.shape_cast %119 : vector<8x12xf32> to vector<1x8x12xf32>
    tpu.vector_store %arg5[%c1_86, %c0_87, %c36_88], %122 {strides = array<i32>} : memref<2x8x144xf32, #tpu.memory_space<vmem>>, vector<1x8x12xf32>,
    %123 = vector.extract_strided_slice %58 {offsets = [0, 320], sizes = [8, 12], strides = [1, 1]} : vector<8x512xf32> to vector<8x12xf32>
    %c1_89 = arith.constant 1 : index
    %c0_90 = arith.constant 0 : index
    %c48_91 = arith.constant 48 : index
    %124 = vector.load %arg5[%c1_89, %c0_90, %c48_91] : memref<2x8x144xf32, #tpu.memory_space<vmem>>, vector<1x8x12xf32>
    %125 = vector.shape_cast %124 : vector<1x8x12xf32> to vector<8x12xf32>
    %126 = vector.shape_cast %123 : vector<8x12xf32> to vector<1x8x12xf32>
    tpu.vector_store %arg5[%c1_89, %c0_90, %c48_91], %126 {strides = array<i32>} : memref<2x8x144xf32, #tpu.memory_space<vmem>>, vector<1x8x12xf32>,
    %127 = vector.extract_strided_slice %58 {offsets = [0, 336], sizes = [8, 12], strides = [1, 1]} : vector<8x512xf32> to vector<8x12xf32>
    %c1_92 = arith.constant 1 : index
    %c0_93 = arith.constant 0 : index
    %c60_94 = arith.constant 60 : index
    %128 = vector.load %arg5[%c1_92, %c0_93, %c60_94] : memref<2x8x144xf32, #tpu.memory_space<vmem>>, vector<1x8x12xf32>
    %129 = vector.shape_cast %128 : vector<1x8x12xf32> to vector<8x12xf32>
    %130 = vector.shape_cast %127 : vector<8x12xf32> to vector<1x8x12xf32>
    tpu.vector_store %arg5[%c1_92, %c0_93, %c60_94], %130 {strides = array<i32>} : memref<2x8x144xf32, #tpu.memory_space<vmem>>, vector<1x8x12xf32>,
    %131 = vector.extract_strided_slice %58 {offsets = [0, 352], sizes = [8, 12], strides = [1, 1]} : vector<8x512xf32> to vector<8x12xf32>
    %c1_95 = arith.constant 1 : index
    %c0_96 = arith.constant 0 : index
    %c72_97 = arith.constant 72 : index
    %132 = vector.load %arg5[%c1_95, %c0_96, %c72_97] : memref<2x8x144xf32, #tpu.memory_space<vmem>>, vector<1x8x12xf32>
    %133 = vector.shape_cast %132 : vector<1x8x12xf32> to vector<8x12xf32>
    %134 = vector.shape_cast %131 : vector<8x12xf32> to vector<1x8x12xf32>
    tpu.vector_store %arg5[%c1_95, %c0_96, %c72_97], %134 {strides = array<i32>} : memref<2x8x144xf32, #tpu.memory_space<vmem>>, vector<1x8x12xf32>,
    %135 = vector.extract_strided_slice %58 {offsets = [0, 368], sizes = [8, 12], strides = [1, 1]} : vector<8x512xf32> to vector<8x12xf32>
    %c1_98 = arith.constant 1 : index
    %c0_99 = arith.constant 0 : index
    %c84_100 = arith.constant 84 : index
    %136 = vector.load %arg5[%c1_98, %c0_99, %c84_100] : memref<2x8x144xf32, #tpu.memory_space<vmem>>, vector<1x8x12xf32>
    %137 = vector.shape_cast %136 : vector<1x8x12xf32> to vector<8x12xf32>
    %138 = vector.shape_cast %135 : vector<8x12xf32> to vector<1x8x12xf32>
    tpu.vector_store %arg5[%c1_98, %c0_99, %c84_100], %138 {strides = array<i32>} : memref<2x8x144xf32, #tpu.memory_space<vmem>>, vector<1x8x12xf32>,
    %139 = vector.extract_strided_slice %58 {offsets = [0, 384], sizes = [8, 12], strides = [1, 1]} : vector<8x512xf32> to vector<8x12xf32>
    %c1_101 = arith.constant 1 : index
    %c0_102 = arith.constant 0 : index
    %c96_103 = arith.constant 96 : index
    %140 = vector.load %arg5[%c1_101, %c0_102, %c96_103] : memref<2x8x144xf32, #tpu.memory_space<vmem>>, vector<1x8x12xf32>
    %141 = vector.shape_cast %140 : vector<1x8x12xf32> to vector<8x12xf32>
    %142 = vector.shape_cast %139 : vector<8x12xf32> to vector<1x8x12xf32>
    tpu.vector_store %arg5[%c1_101, %c0_102, %c96_103], %142 {strides = array<i32>} : memref<2x8x144xf32, #tpu.memory_space<vmem>>, vector<1x8x12xf32>,
    %143 = vector.extract_strided_slice %58 {offsets = [0, 400], sizes = [8, 12], strides = [1, 1]} : vector<8x512xf32> to vector<8x12xf32>
    %c1_104 = arith.constant 1 : index
    %c0_105 = arith.constant 0 : index
    %c108_106 = arith.constant 108 : index
    %144 = vector.load %arg5[%c1_104, %c0_105, %c108_106] : memref<2x8x144xf32, #tpu.memory_space<vmem>>, vector<1x8x12xf32>
    %145 = vector.shape_cast %144 : vector<1x8x12xf32> to vector<8x12xf32>
    %146 = vector.shape_cast %143 : vector<8x12xf32> to vector<1x8x12xf32>
    tpu.vector_store %arg5[%c1_104, %c0_105, %c108_106], %146 {strides = array<i32>} : memref<2x8x144xf32, #tpu.memory_space<vmem>>, vector<1x8x12xf32>,
    %147 = vector.extract_strided_slice %58 {offsets = [0, 416], sizes = [8, 12], strides = [1, 1]} : vector<8x512xf32> to vector<8x12xf32>
    %c1_107 = arith.constant 1 : index
    %c0_108 = arith.constant 0 : index
    %c120_109 = arith.constant 120 : index
    %148 = vector.load %arg5[%c1_107, %c0_108, %c120_109] : memref<2x8x144xf32, #tpu.memory_space<vmem>>, vector<1x8x12xf32>
    %149 = vector.shape_cast %148 : vector<1x8x12xf32> to vector<8x12xf32>
    %150 = vector.shape_cast %147 : vector<8x12xf32> to vector<1x8x12xf32>
    tpu.vector_store %arg5[%c1_107, %c0_108, %c120_109], %150 {strides = array<i32>} : memref<2x8x144xf32, #tpu.memory_space<vmem>>, vector<1x8x12xf32>,
    %151 = vector.extract_strided_slice %58 {offsets = [0, 432], sizes = [8, 12], strides = [1, 1]} : vector<8x512xf32> to vector<8x12xf32>
    %c1_110 = arith.constant 1 : index
    %c0_111 = arith.constant 0 : index
    %c132_112 = arith.constant 132 : index
    %152 = vector.load %arg5[%c1_110, %c0_111, %c132_112] : memref<2x8x144xf32, #tpu.memory_space<vmem>>, vector<1x8x12xf32>
    %153 = vector.shape_cast %152 : vector<1x8x12xf32> to vector<8x12xf32>
    %154 = vector.shape_cast %151 : vector<8x12xf32> to vector<1x8x12xf32>
    tpu.vector_store %arg5[%c1_110, %c0_111, %c132_112], %154 {strides = array<i32>} : memref<2x8x144xf32, #tpu.memory_space<vmem>>, vector<1x8x12xf32>,
    return
  }
}

</mosaic_0001>

<llo_original>
// kernel: ipex_conv_conv_relu.1
$region0: #{ipex_conv_conv_relu.1}
  #allocation0 [shape = 'u32[]', space=smem, size = 0x4, offset = 0x4, fixed_abs, tag = 'smem constant byte address 0x4 - core index']
  #allocation1 [shape = 'u32[144,128]{1,0:T(1,128)}', space=vmem, size = 0x12000, scoped, tag = 'internal scratch']
  #allocation2 [shape = 'f32[72,512]{1,0:T(8,128)}', space=vmem, size = 0x24000, scoped, tag = 'scratch operand']
  %s0 = inlined_call_operand.vmem [shape: f32[2,4,256], index: 0, kind: input, shape index: {}]
  %s1 = inlined_call_operand.vmem [shape: f32[8,36], index: 1, kind: input, shape index: {}]
  %s2 = inlined_call_operand.vmem [shape: f32[8,72], index: 2, kind: input, shape index: {}]
  %s3 = inlined_call_operand.vmem [shape: f32[36,72], index: 3, kind: input, shape index: {}]
  %s4 = inlined_call_operand.vmem [shape: f32[72,72], index: 4, kind: input, shape index: {}]
  %s5 = inlined_call_operand.vmem [shape: f32[2,8,144], index: 5, kind: output, shape index: {}]
  %s6 = sld [smem:[#allocation0]]
  $region30: #{ipex_conv_conv_relu.1} parent=0
    _
  %s8 = ssub.s32 1, %s6
  %s9 = scalar_select 0, %s8, %s6
  // Predicated region
  $region2: #{ipex_conv_conv_relu.1} parent=0 // pred_check
    _
  $region3: #{ipex_conv_conv_relu.1} parent=0 // pred_check_branch
    %11 = sbr.rel (0) target = $region5
  $region4: #{ipex_conv_conv_relu.1} parent=0 // pred_region
    _
  $region5: #{ipex_conv_conv_relu.1} parent=0 // pred_fallthru
    _
  // Predicated region
  $region6: #{ipex_conv_conv_relu.1} parent=0 // pred_check
    _
  $region7: #{ipex_conv_conv_relu.1} parent=0 // pred_check_branch
    %13 = sbr.rel (0) target = $region9
  $region8: #{ipex_conv_conv_relu.1} parent=0 // pred_region
    _
  $region9: #{ipex_conv_conv_relu.1} parent=0 // pred_fallthru
    _
  // Predicated region
  $region10: #{ipex_conv_conv_relu.1} parent=0 // pred_check
    _
  $region11: #{ipex_conv_conv_relu.1} parent=0 // pred_check_branch
    %15 = sbr.rel (0) target = $region13
  $region12: #{ipex_conv_conv_relu.1} parent=0 // pred_region
    _
  $region13: #{ipex_conv_conv_relu.1} parent=0 // pred_fallthru
    _
  // Predicated region
  $region14: #{ipex_conv_conv_relu.1} parent=0 // pred_check
    _
  $region15: #{ipex_conv_conv_relu.1} parent=0 // pred_check_branch
    %17 = sbr.rel (0) target = $region17
  $region16: #{ipex_conv_conv_relu.1} parent=0 // pred_region
    _
  $region17: #{ipex_conv_conv_relu.1} parent=0 // pred_fallthru
    _
  // Predicated region
  $region18: #{ipex_conv_conv_relu.1} parent=0 // pred_check
    _
  $region19: #{ipex_conv_conv_relu.1} parent=0 // pred_check_branch
    %19 = sbr.rel (0) target = $region21
  $region20: #{ipex_conv_conv_relu.1} parent=0 // pred_region
    _
  $region21: #{ipex_conv_conv_relu.1} parent=0 // pred_fallthru
    _
  %v20 = vld [vmem:[%s0] sm:$0xff]
  %v21 = vld [vmem:[%s0 + $0x8] sm:$0xff]
  %v22 = vld [vmem:[%s1] sm:$0xff]
  %v23 = vld [vmem:[%s3] sm:$0xff]
  %v24 = vld [vmem:[%s3 + $0x8] sm:$0xff]
  %v25 = vld [vmem:[%s3 + $0x10] sm:$0xff]
  %v26 = vld [vmem:[%s3 + $0x18] sm:$0xff]
  %v27 = vld [vmem:[%s3 + $0x20] sm:$0xf]
  %vm28 = vcmask 293888
  %v30 = vsel %vm28, %v22, 0
  %vm32 = vcmask 1043456
  %v34 = vsel %vm32, %v27, 0
  %36 = vmatprep.subr.mxu0 0.0
  %37 = vmatpush1.msra.mxu0 %v23
  %38 = vmatprep.subr.mxu0 0.0
  %39 = vmatpush1.msra.mxu0 %v24
  %40 = vmatprep.subr.mxu0 0.0
  %41 = vmatpush1.msra.mxu0 %v25
  %42 = vmatprep.subr.mxu0 0.0
  %43 = vmatpush1.msra.mxu0 %v26
  %44 = vmatprep.subr.mxu0 0.0
  %45 = vmatpush1.msra.mxu0 %v34
  %46 = vmatprep.subr.mxu0 0.0
  %47 = vmatpush1.msra.mxu0 0.0
  %48 = vmatprep.subr.mxu0 0.0
  %49 = vmatpush1.msra.mxu0 0.0
  %50 = vmatprep.subr.mxu0 0.0
  %51 = vmatpush1.msra.mxu0 0.0
  %52 = vmatprep.subr.mxu0 0.0
  %53 = vmatpush1.msra.mxu0 0.0
  %54 = vmatprep.subr.mxu0 0.0
  %55 = vmatpush1.msra.mxu0 0.0
  %56 = vmatprep.subr.mxu0 0.0
  %57 = vmatpush1.msra.mxu0 0.0
  %58 = vmatprep.subr.mxu0 0.0
  %59 = vmatpush1.msra.mxu0 0.0
  %60 = vmatprep.subr.mxu0 0.0
  %61 = vmatpush1.msra.mxu0 0.0
  %62 = vmatprep.subr.mxu0 0.0
  %63 = vmatpush1.msra.mxu0 0.0
  %64 = vmatprep.subr.mxu0 0.0
  %65 = vmatpush1.msra.mxu0 0.0
  %66 = vmatprep.subr.mxu0 0.0
  %67 = vmatpush1.msra.mxu0 0.0
  %68 = vmatprep.subr.mxu0 0.0
  %69 = vmatpush1.msra.mxu0 0.0
  %70 = vmatprep.subr.mxu0 0.0
  %71 = vmatpush1.msra.mxu0 0.0
  %72 = vmatprep.subr.mxu0 0.0
  %73 = vmatpush1.msra.mxu0 0.0
  %74 = vmatprep.subr.mxu0 0.0
  %75 = vmatpush1.msra.mxu0 0.0
  %76 = vmatprep.subr.mxu0 0.0
  %77 = vmatpush1.msra.mxu0 0.0
  %78 = vmatprep.subr.mxu0 0.0
  %79 = vmatpush1.msra.mxu0 0.0
  %80 = vmatprep.subr.mxu0 0.0
  %81 = vmatpush1.msra.mxu0 0.0
  %82 = vmatprep.subr.mxu0 0.0
  %83 = vmatpush1.msra.mxu0 0.0
  %84 = vmatprep.subr.mxu0 0.0
  %85 = vmatpush1.msra.mxu0 0.0
  %86 = vmatprep.subr.mxu0 0.0
  %87 = vmatpush1.msra.mxu0 0.0
  %88 = vmatprep.subr.mxu0 0.0
  %89 = vmatpush1.msra.mxu0 0.0
  %90 = vmatprep.subr.mxu0 0.0
  %91 = vmatpush1.msra.mxu0 0.0
  %92 = vmatprep.subr.mxu0 0.0
  %93 = vmatpush1.msra.mxu0 0.0
  %94 = vmatprep.subr.mxu0 0.0
  %95 = vmatpush1.msra.mxu0 0.0
  %96 = vmatprep.subr.mxu0 0.0
  %97 = vmatpush1.msra.mxu0 0.0
  %98 = vmatprep.subr.mxu0 0.0
  %99 = vmatpush1.msra.mxu0 0.0
  %100 = vmatprep.mubr.f32.mxu0 0.0
  %101 = vmatmul.mubr.f32.gmra.mrb[0].mxu0 %v30
  %v102 = vpop.f32.mrb[0].mxu0
  %v103 = vadd.f32 0.0, %v102
  %v104 = vpop.f32.mrb[0].mxu0
  %105 = vdwg.mxu0
  %v106 = vld [vmem:[%s2] sm:$0xff]
  %v107 = vld [vmem:[%s4] sm:$0xff]
  %v108 = vld [vmem:[%s4 + $0x8] sm:$0xff]
  %v109 = vld [vmem:[%s4 + $0x10] sm:$0xff]
  %v110 = vld [vmem:[%s4 + $0x18] sm:$0xff]
  %v111 = vld [vmem:[%s4 + $0x20] sm:$0xff]
  %v112 = vld [vmem:[%s4 + $0x28] sm:$0xff]
  %v113 = vld [vmem:[%s4 + $0x30] sm:$0xff]
  %v114 = vld [vmem:[%s4 + $0x38] sm:$0xff]
  %v115 = vld [vmem:[%s4 + $0x40] sm:$0xff]
  %vm116 = vcmask 588800
  %v118 = vsel %vm116, %v106, 0
  %120 = vmatprep.subr.mxu0 0.0
  %121 = vmatpush1.msra.mxu0 %v107
  %122 = vmatprep.subr.mxu0 0.0
  %123 = vmatpush1.msra.mxu0 %v108
  %124 = vmatprep.subr.mxu0 0.0
  %125 = vmatpush1.msra.mxu0 %v109
  %126 = vmatprep.subr.mxu0 0.0
  %127 = vmatpush1.msra.mxu0 %v110
  %128 = vmatprep.subr.mxu0 0.0
  %129 = vmatpush1.msra.mxu0 %v111
  %130 = vmatprep.subr.mxu0 0.0
  %131 = vmatpush1.msra.mxu0 %v112
  %132 = vmatprep.subr.mxu0 0.0
  %133 = vmatpush1.msra.mxu0 %v113
  %134 = vmatprep.subr.mxu0 0.0
  %135 = vmatpush1.msra.mxu0 %v114
  %136 = vmatprep.subr.mxu0 0.0
  %137 = vmatpush1.msra.mxu0 %v115
  %138 = vmatprep.subr.mxu0 0.0
  %139 = vmatpush1.msra.mxu0 0.0
  %140 = vmatprep.subr.mxu0 0.0
  %141 = vmatpush1.msra.mxu0 0.0
  %142 = vmatprep.subr.mxu0 0.0
  %143 = vmatpush1.msra.mxu0 0.0
  %144 = vmatprep.subr.mxu0 0.0
  %145 = vmatpush1.msra.mxu0 0.0
  %146 = vmatprep.subr.mxu0 0.0
  %147 = vmatpush1.msra.mxu0 0.0
  %148 = vmatprep.subr.mxu0 0.0
  %149 = vmatpush1.msra.mxu0 0.0
  %150 = vmatprep.subr.mxu0 0.0
  %151 = vmatpush1.msra.mxu0 0.0
  %152 = vmatprep.subr.mxu0 0.0
  %153 = vmatpush1.msra.mxu0 0.0
  %154 = vmatprep.subr.mxu0 0.0
  %155 = vmatpush1.msra.mxu0 0.0
  %156 = vmatprep.subr.mxu0 0.0
  %157 = vmatpush1.msra.mxu0 0.0
  %158 = vmatprep.subr.mxu0 0.0
  %159 = vmatpush1.msra.mxu0 0.0
  %160 = vmatprep.subr.mxu0 0.0
  %161 = vmatpush1.msra.mxu0 0.0
  %162 = vmatprep.subr.mxu0 0.0
  %163 = vmatpush1.msra.mxu0 0.0
  %164 = vmatprep.subr.mxu0 0.0
  %165 = vmatpush1.msra.mxu0 0.0
  %166 = vmatprep.subr.mxu0 0.0
  %167 = vmatpush1.msra.mxu0 0.0
  %168 = vmatprep.subr.mxu0 0.0
  %169 = vmatpush1.msra.mxu0 0.0
  %170 = vmatprep.subr.mxu0 0.0
  %171 = vmatpush1.msra.mxu0 0.0
  %172 = vmatprep.subr.mxu0 0.0
  %173 = vmatpush1.msra.mxu0 0.0
  %174 = vmatprep.subr.mxu0 0.0
  %175 = vmatpush1.msra.mxu0 0.0
  %176 = vmatprep.subr.mxu0 0.0
  %177 = vmatpush1.msra.mxu0 0.0
  %178 = vmatprep.subr.mxu0 0.0
  %179 = vmatpush1.msra.mxu0 0.0
  %180 = vmatprep.subr.mxu0 0.0
  %181 = vmatpush1.msra.mxu0 0.0
  %182 = vmatprep.subr.mxu0 0.0
  %183 = vmatpush1.msra.mxu0 0.0
  %184 = vmatprep.mubr.f32.mxu0 0.0
  %185 = vmatmul.mubr.f32.gmra.mrb[0].mxu0 %v118
  %v186 = vpop.f32.mrb[0].mxu0
  %v187 = vadd.f32 0.0, %v186
  %v188 = vpop.f32.mrb[0].mxu0
  %189 = vdwg.mxu0
  %v191 = vcombine.high %v20, %v20
  %v194 = vcombine.high %v21, %v21
  %196 = vst [vmem:[#allocation2] sm:$0xff] 0.0
  %197 = vst [vmem:[#allocation2 + $0x8] sm:$0xff] 0.0
  %198 = vst [vmem:[#allocation2 + $0x10] sm:$0xff] 0.0
  %199 = vst [vmem:[#allocation2 + $0x18] sm:$0xff] 0.0
  %200 = vst [vmem:[#allocation2 + $0x20] sm:$0xff] 0.0
  %201 = vst [vmem:[#allocation2 + $0x28] sm:$0xff] 0.0
  %202 = vst [vmem:[#allocation2 + $0x30] sm:$0xff] 0.0
  %203 = vst [vmem:[#allocation2 + $0x38] sm:$0xff] 0.0
  %204 = vst [vmem:[#allocation2 + $0x40] sm:$0xff] 0.0
  %205 = vst [vmem:[#allocation2 + $0x48] sm:$0xff] 0.0
  %206 = vst [vmem:[#allocation2 + $0x50] sm:$0xff] 0.0
  %207 = vst [vmem:[#allocation2 + $0x58] sm:$0xff] 0.0
  %208 = vst [vmem:[#allocation2 + $0x60] sm:$0xff] 0.0
  %209 = vst [vmem:[#allocation2 + $0x68] sm:$0xff] 0.0
  %210 = vst [vmem:[#allocation2 + $0x70] sm:$0xff] 0.0
  %211 = vst [vmem:[#allocation2 + $0x78] sm:$0xff] 0.0
  %212 = vst [vmem:[#allocation2 + $0x80] sm:$0xff] 0.0
  %213 = vst [vmem:[#allocation2 + $0x88] sm:$0xff] 0.0
  %214 = vst [vmem:[#allocation2 + $0x90] sm:$0xff] 0.0
  %215 = vst [vmem:[#allocation2 + $0x98] sm:$0xff] 0.0
  %216 = vst [vmem:[#allocation2 + $0xa0] sm:$0xff] 0.0
  %217 = vst [vmem:[#allocation2 + $0xa8] sm:$0xff] 0.0
  %218 = vst [vmem:[#allocation2 + $0xb0] sm:$0xff] 0.0
  %219 = vst [vmem:[#allocation2 + $0xb8] sm:$0xff] 0.0
  %220 = vst [vmem:[#allocation2 + $0xc0] sm:$0xff] 0.0
  %221 = vst [vmem:[#allocation2 + $0xc8] sm:$0xff] 0.0
  %222 = vst [vmem:[#allocation2 + $0xd0] sm:$0xff] 0.0
  %223 = vst [vmem:[#allocation2 + $0xd8] sm:$0xff] 0.0
  %224 = vst [vmem:[#allocation2 + $0xe0] sm:$0xff] 0.0
  %225 = vst [vmem:[#allocation2 + $0xe8] sm:$0xff] 0.0
  %226 = vst [vmem:[#allocation2 + $0xf0] sm:$0xff] 0.0
  %227 = vst [vmem:[#allocation2 + $0xf8] sm:$0xff] 0.0
  %228 = vst [vmem:[#allocation2 + $0x100] sm:$0xff] 0.0
  %229 = vst [vmem:[#allocation2 + $0x108] sm:$0xff] 0.0
  %230 = vst [vmem:[#allocation2 + $0x110] sm:$0xff] 0.0
  %231 = vst [vmem:[#allocation2 + $0x118] sm:$0xff] 0.0
  %232 = vst [vmem:[#allocation2] sm:$0xf] %v20
  %233 = vst [vmem:[#allocation2 + $0x8] sm:$0xf] %v191
  %234 = vst [vmem:[#allocation2 + $0x10] sm:$0xf] %v21
  %235 = vst [vmem:[#allocation2 + $0x18] sm:$0xf] %v194
  %237 = vrot.lane.b32.xlu0 %v20, 127
  %v238 = vpop.permute.xlu0 %237
  %239 = vrot.lane.b32.xlu0 %v191, 127
  %v240 = vpop.permute.xlu0 %239
  %241 = vrot.lane.b32.xlu0 %v21, 127
  %v242 = vpop.permute.xlu0 %241
  %243 = vrot.lane.b32.xlu0 %v194, 127
  %v244 = vpop.permute.xlu0 %243
  %245 = vrot.lane.b32.xlu0 0.0, 127
  %v246 = vpop.permute.xlu0 %245
  %vm247 = vcmask 1039360
  %v248 = vsel %vm247, %v238, %v240
  %v249 = vsel %vm247, %v240, %v242
  %v250 = vsel %vm247, %v242, %v244
  %v251 = vsel %vm247, %v244, %v246
  %256 = vst [vmem:[#allocation2 + $0x20] sm:$0xf] %v248
  %257 = vst [vmem:[#allocation2 + $0x28] sm:$0xf] %v249
  %258 = vst [vmem:[#allocation2 + $0x30] sm:$0xf] %v250
  %259 = vst [vmem:[#allocation2 + $0x38] sm:$0xf] %v251
  %260 = vrot.lane.b32.xlu0 %v20, 126
  %v261 = vpop.permute.xlu0 %260
  %262 = vrot.lane.b32.xlu0 %v191, 126
  %v263 = vpop.permute.xlu0 %262
  %264 = vrot.lane.b32.xlu0 %v21, 126
  %v265 = vpop.permute.xlu0 %264
  %266 = vrot.lane.b32.xlu0 %v194, 126
  %v267 = vpop.permute.xlu0 %266
  %268 = vrot.lane.b32.xlu0 0.0, 126
  %v269 = vpop.permute.xlu0 %268
  %vm270 = vcmask 1031168
  %v271 = vsel %vm270, %v261, %v263
  %v272 = vsel %vm270, %v263, %v265
  %v273 = vsel %vm270, %v265, %v267
  %v274 = vsel %vm270, %v267, %v269
  %279 = vst [vmem:[#allocation2 + $0x40] sm:$0xf] %v271
  %280 = vst [vmem:[#allocation2 + $0x48] sm:$0xf] %v272
  %281 = vst [vmem:[#allocation2 + $0x50] sm:$0xf] %v273
  %282 = vst [vmem:[#allocation2 + $0x58] sm:$0xf] %v274
  %283 = vrot.lane.b32.xlu0 %v20, 112
  %v284 = vpop.permute.xlu0 %283
  %285 = vrot.lane.b32.xlu0 %v191, 112
  %v286 = vpop.permute.xlu0 %285
  %287 = vrot.lane.b32.xlu0 %v21, 112
  %v288 = vpop.permute.xlu0 %287
  %289 = vrot.lane.b32.xlu0 %v194, 112
  %v290 = vpop.permute.xlu0 %289
  %291 = vrot.lane.b32.xlu0 0.0, 112
  %v292 = vpop.permute.xlu0 %291
  %vm293 = vcmask 916480
  %v294 = vsel %vm293, %v284, %v286
  %v295 = vsel %vm293, %v286, %v288
  %v296 = vsel %vm293, %v288, %v290
  %v297 = vsel %vm293, %v290, %v292
  %302 = vst [vmem:[#allocation2 + $0x60] sm:$0xf] %v294
  %303 = vst [vmem:[#allocation2 + $0x68] sm:$0xf] %v295
  %304 = vst [vmem:[#allocation2 + $0x70] sm:$0xf] %v296
  %305 = vst [vmem:[#allocation2 + $0x78] sm:$0xf] %v297
  %306 = vrot.lane.b32.xlu0 %v20, 111
  %v307 = vpop.permute.xlu0 %306
  %308 = vrot.lane.b32.xlu0 %v191, 111
  %v309 = vpop.permute.xlu0 %308
  %310 = vrot.lane.b32.xlu0 %v21, 111
  %v311 = vpop.permute.xlu0 %310
  %312 = vrot.lane.b32.xlu0 %v194, 111
  %v313 = vpop.permute.xlu0 %312
  %314 = vrot.lane.b32.xlu0 0.0, 111
  %v315 = vpop.permute.xlu0 %314
  %vm316 = vcmask 908288
  %v317 = vsel %vm316, %v307, %v309
  %v318 = vsel %vm316, %v309, %v311
  %v319 = vsel %vm316, %v311, %v313
  %v320 = vsel %vm316, %v313, %v315
  %325 = vst [vmem:[#allocation2 + $0x80] sm:$0xf] %v317
  %326 = vst [vmem:[#allocation2 + $0x88] sm:$0xf] %v318
  %327 = vst [vmem:[#allocation2 + $0x90] sm:$0xf] %v319
  %328 = vst [vmem:[#allocation2 + $0x98] sm:$0xf] %v320
  %329 = vrot.lane.b32.xlu0 %v20, 110
  %v330 = vpop.permute.xlu0 %329
  %331 = vrot.lane.b32.xlu0 %v191, 110
  %v332 = vpop.permute.xlu0 %331
  %333 = vrot.lane.b32.xlu0 %v21, 110
  %v334 = vpop.permute.xlu0 %333
  %335 = vrot.lane.b32.xlu0 %v194, 110
  %v336 = vpop.permute.xlu0 %335
  %337 = vrot.lane.b32.xlu0 0.0, 110
  %v338 = vpop.permute.xlu0 %337
  %vm339 = vcmask 900096
  %v340 = vsel %vm339, %v330, %v332
  %v341 = vsel %vm339, %v332, %v334
  %v342 = vsel %vm339, %v334, %v336
  %v343 = vsel %vm339, %v336, %v338
  %348 = vst [vmem:[#allocation2 + $0xa0] sm:$0xf] %v340
  %349 = vst [vmem:[#allocation2 + $0xa8] sm:$0xf] %v341
  %350 = vst [vmem:[#allocation2 + $0xb0] sm:$0xf] %v342
  %351 = vst [vmem:[#allocation2 + $0xb8] sm:$0xf] %v343
  %352 = vrot.lane.b32.xlu0 %v20, 96
  %v353 = vpop.permute.xlu0 %352
  %354 = vrot.lane.b32.xlu0 %v191, 96
  %v355 = vpop.permute.xlu0 %354
  %356 = vrot.lane.b32.xlu0 %v21, 96
  %v357 = vpop.permute.xlu0 %356
  %358 = vrot.lane.b32.xlu0 %v194, 96
  %v359 = vpop.permute.xlu0 %358
  %360 = vrot.lane.b32.xlu0 0.0, 96
  %v361 = vpop.permute.xlu0 %360
  %vm362 = vcmask 785408
  %v363 = vsel %vm362, %v353, %v355
  %v364 = vsel %vm362, %v355, %v357
  %v365 = vsel %vm362, %v357, %v359
  %v366 = vsel %vm362, %v359, %v361
  %371 = vst [vmem:[#allocation2 + $0xc0] sm:$0xf] %v363
  %372 = vst [vmem:[#allocation2 + $0xc8] sm:$0xf] %v364
  %373 = vst [vmem:[#allocation2 + $0xd0] sm:$0xf] %v365
  %374 = vst [vmem:[#allocation2 + $0xd8] sm:$0xf] %v366
  %375 = vrot.lane.b32.xlu0 %v20, 95
  %v376 = vpop.permute.xlu0 %375
  %377 = vrot.lane.b32.xlu0 %v191, 95
  %v378 = vpop.permute.xlu0 %377
  %379 = vrot.lane.b32.xlu0 %v21, 95
  %v380 = vpop.permute.xlu0 %379
  %381 = vrot.lane.b32.xlu0 %v194, 95
  %v382 = vpop.permute.xlu0 %381
  %383 = vrot.lane.b32.xlu0 0.0, 95
  %v384 = vpop.permute.xlu0 %383
  %vm385 = vcmask 777216
  %v386 = vsel %vm385, %v376, %v378
  %v387 = vsel %vm385, %v378, %v380
  %v388 = vsel %vm385, %v380, %v382
  %v389 = vsel %vm385, %v382, %v384
  %394 = vst [vmem:[#allocation2 + $0xe0] sm:$0xf] %v386
  %395 = vst [vmem:[#allocation2 + $0xe8] sm:$0xf] %v387
  %396 = vst [vmem:[#allocation2 + $0xf0] sm:$0xf] %v388
  %397 = vst [vmem:[#allocation2 + $0xf8] sm:$0xf] %v389
  %398 = vrot.lane.b32.xlu0 %v20, 94
  %v399 = vpop.permute.xlu0 %398
  %400 = vrot.lane.b32.xlu0 %v191, 94
  %v401 = vpop.permute.xlu0 %400
  %402 = vrot.lane.b32.xlu0 %v21, 94
  %v403 = vpop.permute.xlu0 %402
  %404 = vrot.lane.b32.xlu0 %v194, 94
  %v405 = vpop.permute.xlu0 %404
  %406 = vrot.lane.b32.xlu0 0.0, 94
  %v407 = vpop.permute.xlu0 %406
  %vm408 = vcmask 769024
  %v409 = vsel %vm408, %v399, %v401
  %v410 = vsel %vm408, %v401, %v403
  %v411 = vsel %vm408, %v403, %v405
  %v412 = vsel %vm408, %v405, %v407
  %417 = vst [vmem:[#allocation2 + $0x100] sm:$0xf] %v409
  %418 = vst [vmem:[#allocation2 + $0x108] sm:$0xf] %v410
  %419 = vst [vmem:[#allocation2 + $0x110] sm:$0xf] %v411
  %420 = vst [vmem:[#allocation2 + $0x118] sm:$0xf] %v412
  %v421 = vld [vmem:[#allocation2] sm:$0xff]
  %v422 = vld [vmem:[#allocation2 + $0x8] sm:$0xff]
  %v423 = vld [vmem:[#allocation2 + $0x10] sm:$0xff]
  %v424 = vld [vmem:[#allocation2 + $0x18] sm:$0xff]
  %v425 = vld [vmem:[#allocation2 + $0x20] sm:$0xff]
  %v426 = vld [vmem:[#allocation2 + $0x28] sm:$0xff]
  %v427 = vld [vmem:[#allocation2 + $0x30] sm:$0xff]
  %v428 = vld [vmem:[#allocation2 + $0x38] sm:$0xff]
  %v429 = vld [vmem:[#allocation2 + $0x40] sm:$0xff]
  %v430 = vld [vmem:[#allocation2 + $0x48] sm:$0xff]
  %v431 = vld [vmem:[#allocation2 + $0x50] sm:$0xff]
  %v432 = vld [vmem:[#allocation2 + $0x58] sm:$0xff]
  %v433 = vld [vmem:[#allocation2 + $0x60] sm:$0xff]
  %v434 = vld [vmem:[#allocation2 + $0x68] sm:$0xff]
  %v435 = vld [vmem:[#allocation2 + $0x70] sm:$0xff]
  %v436 = vld [vmem:[#allocation2 + $0x78] sm:$0xff]
  %v437 = vld [vmem:[#allocation2 + $0x80] sm:$0xff]
  %v438 = vld [vmem:[#allocation2 + $0x88] sm:$0xff]
  %v439 = vld [vmem:[#allocation2 + $0x90] sm:$0xff]
  %v440 = vld [vmem:[#allocation2 + $0x98] sm:$0xff]
  %v441 = vld [vmem:[#allocation2 + $0xa0] sm:$0xff]
  %v442 = vld [vmem:[#allocation2 + $0xa8] sm:$0xff]
  %v443 = vld [vmem:[#allocation2 + $0xb0] sm:$0xff]
  %v444 = vld [vmem:[#allocation2 + $0xb8] sm:$0xff]
  %v445 = vld [vmem:[#allocation2 + $0xc0] sm:$0xff]
  %v446 = vld [vmem:[#allocation2 + $0xc8] sm:$0xff]
  %v447 = vld [vmem:[#allocation2 + $0xd0] sm:$0xff]
  %v448 = vld [vmem:[#allocation2 + $0xd8] sm:$0xff]
  %v449 = vld [vmem:[#allocation2 + $0xe0] sm:$0xff]
  %v450 = vld [vmem:[#allocation2 + $0xe8] sm:$0xff]
  %v451 = vld [vmem:[#allocation2 + $0xf0] sm:$0xff]
  %v452 = vld [vmem:[#allocation2 + $0xf8] sm:$0xff]
  %v453 = vld [vmem:[#allocation2 + $0x100] sm:$0xff]
  %v454 = vld [vmem:[#allocation2 + $0x108] sm:$0xff]
  %v455 = vld [vmem:[#allocation2 + $0x110] sm:$0xff]
  %v456 = vld [vmem:[#allocation2 + $0x118] sm:$0xff]
  %v458 = vsel %vm116, %v103, 0
  %460 = vmatprep.subr.mxu0 %v422
  %461 = vmatpush1.msra.mxu0 %v421
  %462 = vmatprep.subr.mxu0 %v426
  %463 = vmatpush1.msra.mxu0 %v425
  %464 = vmatprep.subr.mxu0 %v430
  %465 = vmatpush1.msra.mxu0 %v429
  %466 = vmatprep.subr.mxu0 %v434
  %467 = vmatpush1.msra.mxu0 %v433
  %468 = vmatprep.subr.mxu0 %v438
  %469 = vmatpush1.msra.mxu0 %v437
  %470 = vmatprep.subr.mxu0 %v442
  %471 = vmatpush1.msra.mxu0 %v441
  %472 = vmatprep.subr.mxu0 %v446
  %473 = vmatpush1.msra.mxu0 %v445
  %474 = vmatprep.subr.mxu0 %v450
  %475 = vmatpush1.msra.mxu0 %v449
  %476 = vmatprep.subr.mxu0 %v454
  %477 = vmatpush1.msra.mxu0 %v453
  %478 = vmatprep.subr.mxu0 0.0
  %479 = vmatpush1.msra.mxu0 0.0
  %480 = vmatprep.subr.mxu0 0.0
  %481 = vmatpush1.msra.mxu0 0.0
  %482 = vmatprep.subr.mxu0 0.0
  %483 = vmatpush1.msra.mxu0 0.0
  %484 = vmatprep.subr.mxu0 0.0
  %485 = vmatpush1.msra.mxu0 0.0
  %486 = vmatprep.subr.mxu0 0.0
  %487 = vmatpush1.msra.mxu0 0.0
  %488 = vmatprep.subr.mxu0 0.0
  %489 = vmatpush1.msra.mxu0 0.0
  %490 = vmatprep.subr.mxu0 0.0
  %491 = vmatpush1.msra.mxu0 0.0
  %492 = vmatprep.subr.mxu0 0.0
  %493 = vmatpush1.msra.mxu0 0.0
  %494 = vmatprep.subr.mxu0 0.0
  %495 = vmatpush1.msra.mxu0 0.0
  %496 = vmatprep.subr.mxu0 0.0
  %497 = vmatpush1.msra.mxu0 0.0
  %498 = vmatprep.subr.mxu0 0.0
  %499 = vmatpush1.msra.mxu0 0.0
  %500 = vmatprep.subr.mxu0 0.0
  %501 = vmatpush1.msra.mxu0 0.0
  %502 = vmatprep.subr.mxu0 0.0
  %503 = vmatpush1.msra.mxu0 0.0
  %504 = vmatprep.subr.mxu0 0.0
  %505 = vmatpush1.msra.mxu0 0.0
  %506 = vmatprep.subr.mxu0 0.0
  %507 = vmatpush1.msra.mxu0 0.0
  %508 = vmatprep.subr.mxu0 0.0
  %509 = vmatpush1.msra.mxu0 0.0
  %510 = vmatprep.subr.mxu0 0.0
  %511 = vmatpush1.msra.mxu0 0.0
  %512 = vmatprep.subr.mxu0 0.0
  %513 = vmatpush1.msra.mxu0 0.0
  %514 = vmatprep.subr.mxu0 0.0
  %515 = vmatpush1.msra.mxu0 0.0
  %516 = vmatprep.subr.mxu0 0.0
  %517 = vmatpush1.msra.mxu0 0.0
  %518 = vmatprep.subr.mxu0 0.0
  %519 = vmatpush1.msra.mxu0 0.0
  %520 = vmatprep.subr.mxu0 0.0
  %521 = vmatpush1.msra.mxu0 0.0
  %522 = vmatprep.subr.mxu0 0.0
  %523 = vmatpush1.msra.mxu0 0.0
  %524 = vmatprep.mubr.f32.mxu0 0.0
  %525 = vmatmul.mubr.f32.gmra.mrb[0].mxu0 %v458
  %v526 = vpop.f32.mrb[0].mxu0
  %v527 = vadd.f32 0.0, %v526
  %v528 = vpop.f32.mrb[0].mxu0
  %v529 = vadd.f32 0.0, %v528
  %530 = vdwg.mxu0
  %531 = vmatprep.subr.mxu0 %v424
  %532 = vmatpush1.msra.mxu0 %v423
  %533 = vmatprep.subr.mxu0 %v428
  %534 = vmatpush1.msra.mxu0 %v427
  %535 = vmatprep.subr.mxu0 %v432
  %536 = vmatpush1.msra.mxu0 %v431
  %537 = vmatprep.subr.mxu0 %v436
  %538 = vmatpush1.msra.mxu0 %v435
  %539 = vmatprep.subr.mxu0 %v440
  %540 = vmatpush1.msra.mxu0 %v439
  %541 = vmatprep.subr.mxu0 %v444
  %542 = vmatpush1.msra.mxu0 %v443
  %543 = vmatprep.subr.mxu0 %v448
  %544 = vmatpush1.msra.mxu0 %v447
  %545 = vmatprep.subr.mxu0 %v452
  %546 = vmatpush1.msra.mxu0 %v451
  %547 = vmatprep.subr.mxu0 %v456
  %548 = vmatpush1.msra.mxu0 %v455
  %549 = vmatprep.subr.mxu0 0.0
  %550 = vmatpush1.msra.mxu0 0.0
  %551 = vmatprep.subr.mxu0 0.0
  %552 = vmatpush1.msra.mxu0 0.0
  %553 = vmatprep.subr.mxu0 0.0
  %554 = vmatpush1.msra.mxu0 0.0
  %555 = vmatprep.subr.mxu0 0.0
  %556 = vmatpush1.msra.mxu0 0.0
  %557 = vmatprep.subr.mxu0 0.0
  %558 = vmatpush1.msra.mxu0 0.0
  %559 = vmatprep.subr.mxu0 0.0
  %560 = vmatpush1.msra.mxu0 0.0
  %561 = vmatprep.subr.mxu0 0.0
  %562 = vmatpush1.msra.mxu0 0.0
  %563 = vmatprep.subr.mxu0 0.0
  %564 = vmatpush1.msra.mxu0 0.0
  %565 = vmatprep.subr.mxu0 0.0
  %566 = vmatpush1.msra.mxu0 0.0
  %567 = vmatprep.subr.mxu0 0.0
  %568 = vmatpush1.msra.mxu0 0.0
  %569 = vmatprep.subr.mxu0 0.0
  %570 = vmatpush1.msra.mxu0 0.0
  %571 = vmatprep.subr.mxu0 0.0
  %572 = vmatpush1.msra.mxu0 0.0
  %573 = vmatprep.subr.mxu0 0.0
  %574 = vmatpush1.msra.mxu0 0.0
  %575 = vmatprep.subr.mxu0 0.0
  %576 = vmatpush1.msra.mxu0 0.0
  %577 = vmatprep.subr.mxu0 0.0
  %578 = vmatpush1.msra.mxu0 0.0
  %579 = vmatprep.subr.mxu0 0.0
  %580 = vmatpush1.msra.mxu0 0.0
  %581 = vmatprep.subr.mxu0 0.0
  %582 = vmatpush1.msra.mxu0 0.0
  %583 = vmatprep.subr.mxu0 0.0
  %584 = vmatpush1.msra.mxu0 0.0
  %585 = vmatprep.subr.mxu0 0.0
  %586 = vmatpush1.msra.mxu0 0.0
  %587 = vmatprep.subr.mxu0 0.0
  %588 = vmatpush1.msra.mxu0 0.0
  %589 = vmatprep.subr.mxu0 0.0
  %590 = vmatpush1.msra.mxu0 0.0
  %591 = vmatprep.subr.mxu0 0.0
  %592 = vmatpush1.msra.mxu0 0.0
  %593 = vmatprep.subr.mxu0 0.0
  %594 = vmatpush1.msra.mxu0 0.0
  %595 = vmatprep.mubr.f32.mxu0 0.0
  %596 = vmatmul.mubr.f32.gmra.mrb[0].mxu0 %v458
  %v597 = vpop.f32.mrb[0].mxu0
  %v598 = vadd.f32 0.0, %v597
  %v599 = vpop.f32.mrb[0].mxu0
  %v600 = vadd.f32 0.0, %v599
  %601 = vdwg.mxu0
  %602 = vst [vmem:[#allocation2] sm:$0xff] %v527
  %603 = vst [vmem:[#allocation2 + $0x8] sm:$0xff] %v529
  %604 = vst [vmem:[#allocation2 + $0x10] sm:$0xff] %v598
  %605 = vst [vmem:[#allocation2 + $0x18] sm:$0xff] %v600
  %610 = vrot.lane.b32.xlu0 %v527, 127
  %v611 = vpop.permute.xlu0 %610
  %612 = vrot.lane.b32.xlu0 %v529, 127
  %v613 = vpop.permute.xlu0 %612
  %614 = vrot.lane.b32.xlu0 %v598, 127
  %v615 = vpop.permute.xlu0 %614
  %616 = vrot.lane.b32.xlu0 %v600, 127
  %v617 = vpop.permute.xlu0 %616
  %v618 = vsel %vm247, %v611, %v613
  %v619 = vsel %vm247, %v613, %v615
  %v620 = vsel %vm247, %v615, %v617
  %v621 = vsel %vm247, %v617, %v246
  %626 = vst [vmem:[#allocation2 + $0x20] sm:$0xff] %v618
  %627 = vst [vmem:[#allocation2 + $0x28] sm:$0xff] %v619
  %628 = vst [vmem:[#allocation2 + $0x30] sm:$0xff] %v620
  %629 = vst [vmem:[#allocation2 + $0x38] sm:$0xff] %v621
  %630 = vrot.lane.b32.xlu0 %v527, 126
  %v631 = vpop.permute.xlu0 %630
  %632 = vrot.lane.b32.xlu0 %v529, 126
  %v633 = vpop.permute.xlu0 %632
  %634 = vrot.lane.b32.xlu0 %v598, 126
  %v635 = vpop.permute.xlu0 %634
  %636 = vrot.lane.b32.xlu0 %v600, 126
  %v637 = vpop.permute.xlu0 %636
  %v638 = vsel %vm270, %v631, %v633
  %v639 = vsel %vm270, %v633, %v635
  %v640 = vsel %vm270, %v635, %v637
  %v641 = vsel %vm270, %v637, %v269
  %646 = vst [vmem:[#allocation2 + $0x40] sm:$0xff] %v638
  %647 = vst [vmem:[#allocation2 + $0x48] sm:$0xff] %v639
  %648 = vst [vmem:[#allocation2 + $0x50] sm:$0xff] %v640
  %649 = vst [vmem:[#allocation2 + $0x58] sm:$0xff] %v641
  %650 = vrot.lane.b32.xlu0 %v527, 112
  %v651 = vpop.permute.xlu0 %650
  %652 = vrot.lane.b32.xlu0 %v529, 112
  %v653 = vpop.permute.xlu0 %652
  %654 = vrot.lane.b32.xlu0 %v598, 112
  %v655 = vpop.permute.xlu0 %654
  %656 = vrot.lane.b32.xlu0 %v600, 112
  %v657 = vpop.permute.xlu0 %656
  %v658 = vsel %vm293, %v651, %v653
  %v659 = vsel %vm293, %v653, %v655
  %v660 = vsel %vm293, %v655, %v657
  %v661 = vsel %vm293, %v657, %v292
  %666 = vst [vmem:[#allocation2 + $0x60] sm:$0xff] %v658
  %667 = vst [vmem:[#allocation2 + $0x68] sm:$0xff] %v659
  %668 = vst [vmem:[#allocation2 + $0x70] sm:$0xff] %v660
  %669 = vst [vmem:[#allocation2 + $0x78] sm:$0xff] %v661
  %670 = vrot.lane.b32.xlu0 %v527, 111
  %v671 = vpop.permute.xlu0 %670
  %672 = vrot.lane.b32.xlu0 %v529, 111
  %v673 = vpop.permute.xlu0 %672
  %674 = vrot.lane.b32.xlu0 %v598, 111
  %v675 = vpop.permute.xlu0 %674
  %676 = vrot.lane.b32.xlu0 %v600, 111
  %v677 = vpop.permute.xlu0 %676
  %v678 = vsel %vm316, %v671, %v673
  %v679 = vsel %vm316, %v673, %v675
  %v680 = vsel %vm316, %v675, %v677
  %v681 = vsel %vm316, %v677, %v315
  %686 = vst [vmem:[#allocation2 + $0x80] sm:$0xff] %v678
  %687 = vst [vmem:[#allocation2 + $0x88] sm:$0xff] %v679
  %688 = vst [vmem:[#allocation2 + $0x90] sm:$0xff] %v680
  %689 = vst [vmem:[#allocation2 + $0x98] sm:$0xff] %v681
  %690 = vrot.lane.b32.xlu0 %v527, 110
  %v691 = vpop.permute.xlu0 %690
  %692 = vrot.lane.b32.xlu0 %v529, 110
  %v693 = vpop.permute.xlu0 %692
  %694 = vrot.lane.b32.xlu0 %v598, 110
  %v695 = vpop.permute.xlu0 %694
  %696 = vrot.lane.b32.xlu0 %v600, 110
  %v697 = vpop.permute.xlu0 %696
  %v698 = vsel %vm339, %v691, %v693
  %v699 = vsel %vm339, %v693, %v695
  %v700 = vsel %vm339, %v695, %v697
  %v701 = vsel %vm339, %v697, %v338
  %706 = vst [vmem:[#allocation2 + $0xa0] sm:$0xff] %v698
  %707 = vst [vmem:[#allocation2 + $0xa8] sm:$0xff] %v699
  %708 = vst [vmem:[#allocation2 + $0xb0] sm:$0xff] %v700
  %709 = vst [vmem:[#allocation2 + $0xb8] sm:$0xff] %v701
  %710 = vrot.lane.b32.xlu0 %v527, 96
  %v711 = vpop.permute.xlu0 %710
  %712 = vrot.lane.b32.xlu0 %v529, 96
  %v713 = vpop.permute.xlu0 %712
  %714 = vrot.lane.b32.xlu0 %v598, 96
  %v715 = vpop.permute.xlu0 %714
  %716 = vrot.lane.b32.xlu0 %v600, 96
  %v717 = vpop.permute.xlu0 %716
  %v718 = vsel %vm362, %v711, %v713
  %v719 = vsel %vm362, %v713, %v715
  %v720 = vsel %vm362, %v715, %v717
  %v721 = vsel %vm362, %v717, %v361
  %726 = vst [vmem:[#allocation2 + $0xc0] sm:$0xff] %v718
  %727 = vst [vmem:[#allocation2 + $0xc8] sm:$0xff] %v719
  %728 = vst [vmem:[#allocation2 + $0xd0] sm:$0xff] %v720
  %729 = vst [vmem:[#allocation2 + $0xd8] sm:$0xff] %v721
  %730 = vrot.lane.b32.xlu0 %v527, 95
  %v731 = vpop.permute.xlu0 %730
  %732 = vrot.lane.b32.xlu0 %v529, 95
  %v733 = vpop.permute.xlu0 %732
  %734 = vrot.lane.b32.xlu0 %v598, 95
  %v735 = vpop.permute.xlu0 %734
  %736 = vrot.lane.b32.xlu0 %v600, 95
  %v737 = vpop.permute.xlu0 %736
  %v738 = vsel %vm385, %v731, %v733
  %v739 = vsel %vm385, %v733, %v735
  %v740 = vsel %vm385, %v735, %v737
  %v741 = vsel %vm385, %v737, %v384
  %746 = vst [vmem:[#allocation2 + $0xe0] sm:$0xff] %v738
  %747 = vst [vmem:[#allocation2 + $0xe8] sm:$0xff] %v739
  %748 = vst [vmem:[#allocation2 + $0xf0] sm:$0xff] %v740
  %749 = vst [vmem:[#allocation2 + $0xf8] sm:$0xff] %v741
  %750 = vrot.lane.b32.xlu0 %v527, 94
  %v751 = vpop.permute.xlu0 %750
  %752 = vrot.lane.b32.xlu0 %v529, 94
  %v753 = vpop.permute.xlu0 %752
  %754 = vrot.lane.b32.xlu0 %v598, 94
  %v755 = vpop.permute.xlu0 %754
  %756 = vrot.lane.b32.xlu0 %v600, 94
  %v757 = vpop.permute.xlu0 %756
  %v758 = vsel %vm408, %v751, %v753
  %v759 = vsel %vm408, %v753, %v755
  %v760 = vsel %vm408, %v755, %v757
  %v761 = vsel %vm408, %v757, %v407
  %766 = vst [vmem:[#allocation2 + $0x100] sm:$0xff] %v758
  %767 = vst [vmem:[#allocation2 + $0x108] sm:$0xff] %v759
  %768 = vst [vmem:[#allocation2 + $0x110] sm:$0xff] %v760
  %769 = vst [vmem:[#allocation2 + $0x118] sm:$0xff] %v761
  %v770 = vld [vmem:[#allocation2] sm:$0xff]
  %v771 = vld [vmem:[#allocation2 + $0x8] sm:$0xff]
  %v772 = vld [vmem:[#allocation2 + $0x10] sm:$0xff]
  %v773 = vld [vmem:[#allocation2 + $0x18] sm:$0xff]
  %v774 = vld [vmem:[#allocation2 + $0x20] sm:$0xff]
  %v775 = vld [vmem:[#allocation2 + $0x28] sm:$0xff]
  %v776 = vld [vmem:[#allocation2 + $0x30] sm:$0xff]
  %v777 = vld [vmem:[#allocation2 + $0x38] sm:$0xff]
  %v778 = vld [vmem:[#allocation2 + $0x40] sm:$0xff]
  %v779 = vld [vmem:[#allocation2 + $0x48] sm:$0xff]
  %v780 = vld [vmem:[#allocation2 + $0x50] sm:$0xff]
  %v781 = vld [vmem:[#allocation2 + $0x58] sm:$0xff]
  %v782 = vld [vmem:[#allocation2 + $0x60] sm:$0xff]
  %v783 = vld [vmem:[#allocation2 + $0x68] sm:$0xff]
  %v784 = vld [vmem:[#allocation2 + $0x70] sm:$0xff]
  %v785 = vld [vmem:[#allocation2 + $0x78] sm:$0xff]
  %v786 = vld [vmem:[#allocation2 + $0x80] sm:$0xff]
  %v787 = vld [vmem:[#allocation2 + $0x88] sm:$0xff]
  %v788 = vld [vmem:[#allocation2 + $0x90] sm:$0xff]
  %v789 = vld [vmem:[#allocation2 + $0x98] sm:$0xff]
  %v790 = vld [vmem:[#allocation2 + $0xa0] sm:$0xff]
  %v791 = vld [vmem:[#allocation2 + $0xa8] sm:$0xff]
  %v792 = vld [vmem:[#allocation2 + $0xb0] sm:$0xff]
  %v793 = vld [vmem:[#allocation2 + $0xb8] sm:$0xff]
  %v794 = vld [vmem:[#allocation2 + $0xc0] sm:$0xff]
  %v795 = vld [vmem:[#allocation2 + $0xc8] sm:$0xff]
  %v796 = vld [vmem:[#allocation2 + $0xd0] sm:$0xff]
  %v797 = vld [vmem:[#allocation2 + $0xd8] sm:$0xff]
  %v798 = vld [vmem:[#allocation2 + $0xe0] sm:$0xff]
  %v799 = vld [vmem:[#allocation2 + $0xe8] sm:$0xff]
  %v800 = vld [vmem:[#allocation2 + $0xf0] sm:$0xff]
  %v801 = vld [vmem:[#allocation2 + $0xf8] sm:$0xff]
  %v802 = vld [vmem:[#allocation2 + $0x100] sm:$0xff]
  %v803 = vld [vmem:[#allocation2 + $0x108] sm:$0xff]
  %v804 = vld [vmem:[#allocation2 + $0x110] sm:$0xff]
  %v805 = vld [vmem:[#allocation2 + $0x118] sm:$0xff]
  %v807 = vsel %vm116, %v187, 0
  %809 = vmatprep.subr.mxu0 %v771
  %810 = vmatpush1.msra.mxu0 %v770
  %811 = vmatprep.subr.mxu0 %v775
  %812 = vmatpush1.msra.mxu0 %v774
  %813 = vmatprep.subr.mxu0 %v779
  %814 = vmatpush1.msra.mxu0 %v778
  %815 = vmatprep.subr.mxu0 %v783
  %816 = vmatpush1.msra.mxu0 %v782
  %817 = vmatprep.subr.mxu0 %v787
  %818 = vmatpush1.msra.mxu0 %v786
  %819 = vmatprep.subr.mxu0 %v791
  %820 = vmatpush1.msra.mxu0 %v790
  %821 = vmatprep.subr.mxu0 %v795
  %822 = vmatpush1.msra.mxu0 %v794
  %823 = vmatprep.subr.mxu0 %v799
  %824 = vmatpush1.msra.mxu0 %v798
  %825 = vmatprep.subr.mxu0 %v803
  %826 = vmatpush1.msra.mxu0 %v802
  %827 = vmatprep.subr.mxu0 0.0
  %828 = vmatpush1.msra.mxu0 0.0
  %829 = vmatprep.subr.mxu0 0.0
  %830 = vmatpush1.msra.mxu0 0.0
  %831 = vmatprep.subr.mxu0 0.0
  %832 = vmatpush1.msra.mxu0 0.0
  %833 = vmatprep.subr.mxu0 0.0
  %834 = vmatpush1.msra.mxu0 0.0
  %835 = vmatprep.subr.mxu0 0.0
  %836 = vmatpush1.msra.mxu0 0.0
  %837 = vmatprep.subr.mxu0 0.0
  %838 = vmatpush1.msra.mxu0 0.0
  %839 = vmatprep.subr.mxu0 0.0
  %840 = vmatpush1.msra.mxu0 0.0
  %841 = vmatprep.subr.mxu0 0.0
  %842 = vmatpush1.msra.mxu0 0.0
  %843 = vmatprep.subr.mxu0 0.0
  %844 = vmatpush1.msra.mxu0 0.0
  %845 = vmatprep.subr.mxu0 0.0
  %846 = vmatpush1.msra.mxu0 0.0
  %847 = vmatprep.subr.mxu0 0.0
  %848 = vmatpush1.msra.mxu0 0.0
  %849 = vmatprep.subr.mxu0 0.0
  %850 = vmatpush1.msra.mxu0 0.0
  %851 = vmatprep.subr.mxu0 0.0
  %852 = vmatpush1.msra.mxu0 0.0
  %853 = vmatprep.subr.mxu0 0.0
  %854 = vmatpush1.msra.mxu0 0.0
  %855 = vmatprep.subr.mxu0 0.0
  %856 = vmatpush1.msra.mxu0 0.0
  %857 = vmatprep.subr.mxu0 0.0
  %858 = vmatpush1.msra.mxu0 0.0
  %859 = vmatprep.subr.mxu0 0.0
  %860 = vmatpush1.msra.mxu0 0.0
  %861 = vmatprep.subr.mxu0 0.0
  %862 = vmatpush1.msra.mxu0 0.0
  %863 = vmatprep.subr.mxu0 0.0
  %864 = vmatpush1.msra.mxu0 0.0
  %865 = vmatprep.subr.mxu0 0.0
  %866 = vmatpush1.msra.mxu0 0.0
  %867 = vmatprep.subr.mxu0 0.0
  %868 = vmatpush1.msra.mxu0 0.0
  %869 = vmatprep.subr.mxu0 0.0
  %870 = vmatpush1.msra.mxu0 0.0
  %871 = vmatprep.subr.mxu0 0.0
  %872 = vmatpush1.msra.mxu0 0.0
  %873 = vmatprep.mubr.f32.mxu0 0.0
  %874 = vmatmul.mubr.f32.gmra.mrb[0].mxu0 %v807
  %v875 = vpop.f32.mrb[0].mxu0
  %v876 = vadd.f32 0.0, %v875
  %v877 = vpop.f32.mrb[0].mxu0
  %v878 = vadd.f32 0.0, %v877
  %879 = vdwg.mxu0
  %880 = vmatprep.subr.mxu0 %v773
  %881 = vmatpush1.msra.mxu0 %v772
  %882 = vmatprep.subr.mxu0 %v777
  %883 = vmatpush1.msra.mxu0 %v776
  %884 = vmatprep.subr.mxu0 %v781
  %885 = vmatpush1.msra.mxu0 %v780
  %886 = vmatprep.subr.mxu0 %v785
  %887 = vmatpush1.msra.mxu0 %v784
  %888 = vmatprep.subr.mxu0 %v789
  %889 = vmatpush1.msra.mxu0 %v788
  %890 = vmatprep.subr.mxu0 %v793
  %891 = vmatpush1.msra.mxu0 %v792
  %892 = vmatprep.subr.mxu0 %v797
  %893 = vmatpush1.msra.mxu0 %v796
  %894 = vmatprep.subr.mxu0 %v801
  %895 = vmatpush1.msra.mxu0 %v800
  %896 = vmatprep.subr.mxu0 %v805
  %897 = vmatpush1.msra.mxu0 %v804
  %898 = vmatprep.subr.mxu0 0.0
  %899 = vmatpush1.msra.mxu0 0.0
  %900 = vmatprep.subr.mxu0 0.0
  %901 = vmatpush1.msra.mxu0 0.0
  %902 = vmatprep.subr.mxu0 0.0
  %903 = vmatpush1.msra.mxu0 0.0
  %904 = vmatprep.subr.mxu0 0.0
  %905 = vmatpush1.msra.mxu0 0.0
  %906 = vmatprep.subr.mxu0 0.0
  %907 = vmatpush1.msra.mxu0 0.0
  %908 = vmatprep.subr.mxu0 0.0
  %909 = vmatpush1.msra.mxu0 0.0
  %910 = vmatprep.subr.mxu0 0.0
  %911 = vmatpush1.msra.mxu0 0.0
  %912 = vmatprep.subr.mxu0 0.0
  %913 = vmatpush1.msra.mxu0 0.0
  %914 = vmatprep.subr.mxu0 0.0
  %915 = vmatpush1.msra.mxu0 0.0
  %916 = vmatprep.subr.mxu0 0.0
  %917 = vmatpush1.msra.mxu0 0.0
  %918 = vmatprep.subr.mxu0 0.0
  %919 = vmatpush1.msra.mxu0 0.0
  %920 = vmatprep.subr.mxu0 0.0
  %921 = vmatpush1.msra.mxu0 0.0
  %922 = vmatprep.subr.mxu0 0.0
  %923 = vmatpush1.msra.mxu0 0.0
  %924 = vmatprep.subr.mxu0 0.0
  %925 = vmatpush1.msra.mxu0 0.0
  %926 = vmatprep.subr.mxu0 0.0
  %927 = vmatpush1.msra.mxu0 0.0
  %928 = vmatprep.subr.mxu0 0.0
  %929 = vmatpush1.msra.mxu0 0.0
  %930 = vmatprep.subr.mxu0 0.0
  %931 = vmatpush1.msra.mxu0 0.0
  %932 = vmatprep.subr.mxu0 0.0
  %933 = vmatpush1.msra.mxu0 0.0
  %934 = vmatprep.subr.mxu0 0.0
  %935 = vmatpush1.msra.mxu0 0.0
  %936 = vmatprep.subr.mxu0 0.0
  %937 = vmatpush1.msra.mxu0 0.0
  %938 = vmatprep.subr.mxu0 0.0
  %939 = vmatpush1.msra.mxu0 0.0
  %940 = vmatprep.subr.mxu0 0.0
  %941 = vmatpush1.msra.mxu0 0.0
  %942 = vmatprep.subr.mxu0 0.0
  %943 = vmatpush1.msra.mxu0 0.0
  %944 = vmatprep.mubr.f32.mxu0 0.0
  %945 = vmatmul.mubr.f32.gmra.mrb[0].mxu0 %v807
  %v946 = vpop.f32.mrb[0].mxu0
  %v947 = vadd.f32 0.0, %v946
  %v948 = vpop.f32.mrb[0].mxu0
  %v949 = vadd.f32 0.0, %v948
  %950 = vdwg.mxu0
  %v951 = vmax.f32 %v876, 0.0
  %v952 = vmax.f32 %v878, 0.0
  %v953 = vmax.f32 %v947, 0.0
  %v954 = vmax.f32 %v949, 0.0
  %vm955 = vcmask 97280
  %956 = vst.msk [vmem:[%s5] sm:$0xff] %vm955, %v951
  %958 = vrot.lane.b32.xlu0 %v951, 124
  %v959 = vpop.permute.xlu0 %958
  %vm961 = vcmask 195680
  %962 = vst.msk [vmem:[%s5] sm:$0xff] %vm961, %v959
  %963 = vrot.lane.b32.xlu0 %v951, 120
  %v964 = vpop.permute.xlu0 %963
  %vm966 = vcmask 294080
  %967 = vst.msk [vmem:[%s5] sm:$0xff] %vm966, %v964
  %968 = vrot.lane.b32.xlu0 %v951, 116
  %v969 = vpop.permute.xlu0 %968
  %vm971 = vcmask 392480
  %972 = vst.msk [vmem:[%s5] sm:$0xff] %vm971, %v969
  %973 = vrot.lane.b32.xlu0 %v951, 112
  %v974 = vpop.permute.xlu0 %973
  %vm976 = vcmask 490880
  %977 = vst.msk [vmem:[%s5] sm:$0xff] %vm976, %v974
  %978 = vrot.lane.b32.xlu0 %v951, 108
  %v979 = vpop.permute.xlu0 %978
  %vm981 = vcmask 589280
  %982 = vst.msk [vmem:[%s5] sm:$0xff] %vm981, %v979
  %983 = vrot.lane.b32.xlu0 %v951, 104
  %v984 = vpop.permute.xlu0 %983
  %vm986 = vcmask 687680
  %987 = vst.msk [vmem:[%s5] sm:$0xff] %vm986, %v984
  %988 = vrot.lane.b32.xlu0 %v951, 100
  %v989 = vpop.permute.xlu0 %988
  %vm991 = vcmask 786080
  %992 = vst.msk [vmem:[%s5] sm:$0xff] %vm991, %v989
  %994 = vrot.lane.b32.xlu0 %v952, 96
  %v995 = vpop.permute.xlu0 %994
  %vm997 = vcmask 884480
  %998 = vst.msk [vmem:[%s5] sm:$0xff] %vm997, %v995
  %999 = vrot.lane.b32.xlu0 %v952, 92
  %v1000 = vpop.permute.xlu0 %999
  %vm1002 = vcmask 982880
  %1003 = vst.msk [vmem:[%s5] sm:$0xff] %vm1002, %v1000
  %1004 = vrot.lane.b32.xlu0 %v952, 88
  %v1005 = vpop.permute.xlu0 %1004
  %vm1007 = vcmask 1048512
  %1008 = vst.msk [vmem:[%s5] sm:$0xff] %vm1007, %v1005
  %vm1009 = vcmask 31744
  %1010 = vst.msk [vmem:[%s5 + $0x8] sm:$0xff] %vm1009, %v1005
  %1011 = vrot.lane.b32.xlu0 %v952, 84
  %v1012 = vpop.permute.xlu0 %1011
  %vm1014 = vcmask 130080
  %1015 = vst.msk [vmem:[%s5 + $0x8] sm:$0xff] %vm1014, %v1012
  %s1016 = scalar_lea.vmem %s5, 16
  %1017 = vst.msk [vmem:[%s1016] sm:$0xff] %vm955, %v953
  %1019 = vrot.lane.b32.xlu0 %v953, 124
  %v1020 = vpop.permute.xlu0 %1019
  %1022 = vst.msk [vmem:[%s1016] sm:$0xff] %vm961, %v1020
  %1023 = vrot.lane.b32.xlu0 %v953, 120
  %v1024 = vpop.permute.xlu0 %1023
  %1026 = vst.msk [vmem:[%s1016] sm:$0xff] %vm966, %v1024
  %1027 = vrot.lane.b32.xlu0 %v953, 116
  %v1028 = vpop.permute.xlu0 %1027
  %1030 = vst.msk [vmem:[%s1016] sm:$0xff] %vm971, %v1028
  %1031 = vrot.lane.b32.xlu0 %v953, 112
  %v1032 = vpop.permute.xlu0 %1031
  %1034 = vst.msk [vmem:[%s1016] sm:$0xff] %vm976, %v1032
  %1035 = vrot.lane.b32.xlu0 %v953, 108
  %v1036 = vpop.permute.xlu0 %1035
  %1038 = vst.msk [vmem:[%s1016] sm:$0xff] %vm981, %v1036
  %1039 = vrot.lane.b32.xlu0 %v953, 104
  %v1040 = vpop.permute.xlu0 %1039
  %1042 = vst.msk [vmem:[%s1016] sm:$0xff] %vm986, %v1040
  %1043 = vrot.lane.b32.xlu0 %v953, 100
  %v1044 = vpop.permute.xlu0 %1043
  %1046 = vst.msk [vmem:[%s1016] sm:$0xff] %vm991, %v1044
  %1048 = vrot.lane.b32.xlu0 %v954, 96
  %v1049 = vpop.permute.xlu0 %1048
  %1051 = vst.msk [vmem:[%s1016] sm:$0xff] %vm997, %v1049
  %1052 = vrot.lane.b32.xlu0 %v954, 92
  %v1053 = vpop.permute.xlu0 %1052
  %1055 = vst.msk [vmem:[%s1016] sm:$0xff] %vm1002, %v1053
  %1056 = vrot.lane.b32.xlu0 %v954, 88
  %v1057 = vpop.permute.xlu0 %1056
  %1059 = vst.msk [vmem:[%s1016] sm:$0xff] %vm1007, %v1057
  %1060 = vst.msk [vmem:[%s1016 + $0x8] sm:$0xff] %vm1009, %v1057
  %1061 = vrot.lane.b32.xlu0 %v954, 84
  %v1062 = vpop.permute.xlu0 %1061
  %1064 = vst.msk [vmem:[%s1016 + $0x8] sm:$0xff] %vm1014, %v1062
  // Predicated region
  $region22: #{ipex_conv_conv_relu.1} parent=0 // pred_check
    _
  $region23: #{ipex_conv_conv_relu.1} parent=0 // pred_check_branch
    %1066 = sbr.rel (0) target = $region25
  $region24: #{ipex_conv_conv_relu.1} parent=0 // pred_region
    _
  $region25: #{ipex_conv_conv_relu.1} parent=0 // pred_fallthru
    _
  // Predicated region
  $region26: #{ipex_conv_conv_relu.1} parent=0 // pred_check
    _
  $region27: #{ipex_conv_conv_relu.1} parent=0 // pred_check_branch
    %1068 = sbr.rel (0) target = $region29
  $region28: #{ipex_conv_conv_relu.1} parent=0 // pred_region
    _
  $region29: #{ipex_conv_conv_relu.1} parent=0 // pred_fallthru
    _

</llo_original>
